<compile_context>
chip_gen: v7x
topology: tpu7x:2x2x1
jax: 0.10.0
libtpu: 0.0.40
codegen_flags: <defaults>
</compile_context>

<pallas_src>
import functools
import numpy as np
import jax
import jax.numpy as jnp
from jax.experimental import pallas as pl
from jax.experimental.pallas import tpu as pltpu


# ---------------------------------------------------------------------------
# Host-side interpolation-matrix construction (numpy, lru-cached per size)
# ---------------------------------------------------------------------------
def _round_up(x: int, m: int) -> int:
    return ((x + m - 1) // m) * m


def _bilinear_matrix(out_size: int, in_size: int) -> np.ndarray:
    """Row-stochastic matrix reproducing torch bilinear, align_corners=False."""
    scale = in_size / out_size
    dst = np.arange(out_size, dtype=np.float64)
    src = (dst + 0.5) * scale - 0.5
    src = np.maximum(src, 0.0)                     # torch clamps negative src to 0
    i0 = np.minimum(np.floor(src).astype(np.int64), in_size - 1)
    i1 = np.minimum(i0 + 1, in_size - 1)
    lam = src - i0
    w = np.zeros((out_size, in_size), dtype=np.float32)
    rows = np.arange(out_size)
    w[rows, i0] += (1.0 - lam).astype(np.float32)
    w[rows, i1] += lam.astype(np.float32)
    return w


def _nearest_src_idx(out_size: int, in_size: int) -> np.ndarray:
    """Source indices reproducing torch 'nearest' (floor(dst*in/out), clamped)."""
    scale = in_size / out_size
    return np.minimum((np.arange(out_size) * scale).astype(np.int64), in_size - 1)


@functools.lru_cache(maxsize=None)
def _combined_matrices_np(hm, wm, hp, wp, rh, rw, oh, ow):
    """Fused (nearest∘crop)∘bilinear interpolation matrices for one sample.

    Returns numpy arrays:
      A  : (Oh, Hm) = G_h @ R_h        (gather rows of the bilinear matrix)
      Bt : (Wm, Ow) = R_w^T @ G_w^T
    """
    r_h = _bilinear_matrix(hp, hm)                      # (Hp, Hm)
    r_w = _bilinear_matrix(wp, wm)                      # (Wp, Wm)
    src_h = _nearest_src_idx(oh, rh)                    # crop to rh baked in
    src_w = _nearest_src_idx(ow, rw)                    # crop to rw baked in
    a = r_h[src_h].astype(np.float32)                   # (Oh, Hm)
    bt = r_w[src_w].T.astype(np.float32)                # (Wm, Ow)
    return a, bt


# ---------------------------------------------------------------------------
# Heuristics: TensorCore count & VMEM-budgeted q-block size
# ---------------------------------------------------------------------------
_VMEM_LIMIT_BYTES = 32 * 1024 * 1024      # safe scoped limit on v5e/v6e/v7x
_VMEM_BLOCK_BUDGET = 16 * 1024 * 1024     # budget for double-buffered blocks
_MAX_QB_UNROLL = 32                       # cap the static per-q unroll


def _num_tensorcores_per_chip() -> int:
    try:
        kind = jax.devices()[0].device_kind.lower()
        if "v7" in kind:
            return 2
    except Exception:
        pass
    return 1


def _choose_qb(q, b, hm, wm, oh_pad, ow_pad, in_itemsize, out_itemsize):
    """Largest divisor of q whose double-buffered blocks fit the VMEM budget,
    shrunk only if needed to give every TensorCore a parallel block."""
    def est(qb):
        out_blk = qb * oh_pad * ow_pad * out_itemsize
        in_blk = qb * hm * wm * in_itemsize
        a_blk = oh_pad * hm * 4
        bt_blk = wm * ow_pad * 4
        inter = 4 * oh_pad * ow_pad * 4           # live f32 matmul intermediates
        return 2 * (out_blk + in_blk + a_blk + bt_blk) + inter

    divisors = [d for d in range(1, q + 1) if q % d == 0 and d <= _MAX_QB_UNROLL]
    fitting = [d for d in divisors if est(d) <= _VMEM_BLOCK_BUDGET]
    qb = max(fitting) if fitting else 1

    n_cores = _num_tensorcores_per_chip()
    while b * (q // qb) < n_cores:
        smaller = [d for d in divisors if d < qb]
        if not smaller:
            break
        qb = max(smaller)
    return qb


# ---------------------------------------------------------------------------
# Pallas kernel: fused bilinear + threshold + crop + nearest (whole batch)
# ---------------------------------------------------------------------------
def _fused_mask_kernel(m_ref, a_ref, bt_ref, o_ref):
    # m_ref : (qb, Hm, Wm)        raw mask logits (native dtype)
    # a_ref : (Oh_pad, Hm)        combined H-side interpolation matrix (f32)
    # bt_ref: (Wm, Ow_pad)        combined W-side interpolation matrix (f32)
    # o_ref : (qb, Oh_pad, Ow_pad) thresholded masks (0/1, bf16)
    a = a_ref[...]
    bt = bt_ref[...]
    qb = m_ref.shape[0]
    # Static unroll over the q-block (qb is VMEM-budgeted & capped); plain 2-D
    # MXU matmuls — no broadcasted-A batched einsum, no in-kernel transposes.
    for iq in range(qb):
        m_q = m_ref[iq].astype(jnp.float32)                        # (Hm, Wm)
        # H-side first: lane padding (Ow_pad) only hits the last matmul.
        y = jnp.dot(a, m_q, preferred_element_type=jnp.float32)    # (Oh_pad, Wm)
        z = jnp.dot(y, bt, preferred_element_type=jnp.float32)     # (Oh_pad, Ow_pad)
        # sigmoid(z) > 0.5  ==  z > 0  (monotone) — no transcendental needed.
        o_ref[iq] = (z > 0.0).astype(o_ref.dtype)


def fused_resample_threshold(masks, a_stack, bt_stack, qb,
                             out_dtype=jnp.bfloat16):
    """masks: (B, Q, Hm, Wm) logits -> (B, Q, Oh_pad, Ow_pad) binary masks."""
    b, q, hm, wm = masks.shape
    oh_pad = a_stack.shape[1]
    ow_pad = bt_stack.shape[2]
    out_itemsize = jnp.dtype(out_dtype).itemsize
    flops = 2 * b * q * oh_pad * (hm * wm + wm * ow_pad)
    bytes_accessed = (masks.size * jnp.dtype(masks.dtype).itemsize
                      + a_stack.size * 4 + bt_stack.size * 4
                      + b * q * oh_pad * ow_pad * out_itemsize)

    return pl.pallas_call(
        _fused_mask_kernel,
        out_shape=jax.ShapeDtypeStruct((b, q, oh_pad, ow_pad), out_dtype),
        grid=(b, q // qb),
        in_specs=[
            pl.BlockSpec((None, qb, hm, wm), lambda bi, qi: (bi, qi, 0, 0)),
            pl.BlockSpec((None, oh_pad, hm), lambda bi, qi: (bi, 0, 0)),
            pl.BlockSpec((None, wm, ow_pad), lambda bi, qi: (bi, 0, 0)),
        ],
        out_specs=pl.BlockSpec((None, qb, oh_pad, ow_pad),
                               lambda bi, qi: (bi, qi, 0, 0)),
        compiler_params=pltpu.CompilerParams(
            dimension_semantics=("parallel", "parallel"),
            vmem_limit_bytes=_VMEM_LIMIT_BYTES),
        cost_estimate=pl.CostEstimate(flops=flops, transcendentals=0,
                                      bytes_accessed=bytes_accessed),
    )(masks, a_stack, bt_stack)


# ---------------------------------------------------------------------------
# Module
# ---------------------------------------------------------------------------
class A2DSentencesPostProcess:
    """JAX/Pallas port of the PyTorch A2DSentencesPostProcess (no parameters)."""

    def __call__(self, outputs, resized_padded_sample_size,
                 resized_sample_sizes, orig_sample_sizes):
        long_outputs, _short_outputs = outputs[0], outputs[1]
        # NOTE: the reference computes short-branch masks and then discards
        # them (pred_masks = long_pred_masks); that dead work is skipped here.

        # --- scores = softmax(pred_is_referred)[..., 0] --------------------
        # Tiny (B, Q, C) op: plain XLA fuses this for free.
        pred_is_referred = long_outputs['pred_is_referred']          # (B, Q, C)
        scores = jax.nn.softmax(
            pred_is_referred.astype(jnp.float32), axis=-1)[..., 0]   # (B, Q)

        hp = int(resized_padded_sample_size[0])
        wp = int(resized_padded_sample_size[1])
        long_pred_masks = long_outputs['pred_masks']                 # (B, Q, Hm, Wm)
        b, q, hm, wm = (int(d) for d in long_pred_masks.shape)

        sizes = [(int(rs[0]), int(rs[1]), int(os[0]), int(os[1]))
                 for rs, os in zip(resized_sample_sizes, orig_sample_sizes)]
        oh_pad = max(16, _round_up(max(s[2] for s in sizes), 16))    # sublane-dense
        ow_pad = max(128, _round_up(max(s[3] for s in sizes), 128))  # lane-dense

        # Stack the per-sample fused interpolation matrices, zero-padded to the
        # batch max, so ONE pallas_call covers the whole batch (no per-sample
        # launches, no per-size recompiles).
        a_np = np.zeros((b, oh_pad, hm), np.float32)
        bt_np = np.zeros((b, wm, ow_pad), np.float32)
        for i, (rh_i, rw_i, oh_i, ow_i) in enumerate(sizes):
            a_i, bt_i = _combined_matrices_np(hm, wm, hp, wp,
                                              rh_i, rw_i, oh_i, ow_i)
            a_np[i, :oh_i, :] = a_i
            bt_np[i, :, :ow_i] = bt_i
        a_stack = jnp.asarray(a_np)
        bt_stack = jnp.asarray(bt_np)

        qb = _choose_qb(q, b, hm, wm, oh_pad, ow_pad,
                        jnp.dtype(long_pred_masks.dtype).itemsize,
                        jnp.dtype(jnp.bfloat16).itemsize)

        # Fused bilinear + sigmoid>0.5 + crop + nearest, bf16 binary output.
        out = fused_resample_threshold(long_pred_masks, a_stack, bt_stack, qb)

        processed_pred_masks, rle_masks = [], []
        for i, (_, _, oh_i, ow_i) in enumerate(sizes):
            # Crop slice + f32 cast fused into one small XLA op (reference
            # semantics: float masks of shape (Q, 1, Oh, Ow)).
            f = out[i, :, :oh_i, :ow_i].astype(jnp.float32)[:, None]
            processed_pred_masks.append(f)
            # TODO(synk): pycocotools mask_util.encode (RLE) is a CPU-side op with no Pallas equivalent.
            rle_masks.append(None)

        predictions = [{'scores': s, 'masks': m, 'rle_masks': rle}
                       for s, m, rle in zip(scores, processed_pred_masks, rle_masks)]
        return predictions


# ---------------------------------------------------------------------------
# Demo
# ---------------------------------------------------------------------------
if __name__ == "__main__":
    key = jax.random.PRNGKey(0)
    k1, k2, k3 = jax.random.split(key, 3)

    B, Q, HM, WM = 2, 4, 16, 16
    outputs = (
        {
            'pred_is_referred': jax.random.normal(k1, (B, Q, 2), jnp.float32),
            'pred_masks': jax.random.normal(k2, (B, Q, HM, WM), jnp.float32),
        },
        {
            'pred_masks': jax.random.normal(k3, (B, Q, HM, WM), jnp.float32),
        },
    )

    resized_padded_sample_size = (32, 32)
    resized_sample_sizes = [(28, 30), (32, 24)]
    orig_sample_sizes = [(40, 36), (48, 44)]

    postprocess = A2DSentencesPostProcess()
    predictions = postprocess(outputs, resized_padded_sample_size,
                              resized_sample_sizes, orig_sample_sizes)

    for p in predictions:
        jax.block_until_ready(p['scores'])
        jax.block_until_ready(p['masks'])

    assert predictions[0]['scores'].shape == (Q,)
    assert predictions[0]['masks'].shape == (Q, 1, 40, 36)
    assert predictions[1]['masks'].shape == (Q, 1, 48, 44)
    # masks are binary 0/1 floats
    assert bool(jnp.all((predictions[0]['masks'] == 0.0)
                        | (predictions[0]['masks'] == 1.0)))
    assert bool(jnp.all((predictions[1]['masks'] == 0.0)
                        | (predictions[1]['masks'] == 1.0)))

    print("KERNEL_OK")
</pallas_src>

<mosaic_0001>
module attributes {stable_mosaic.version = 11 : i64} {
  func.func @_fused_mask_kernel(%arg0: i32, %arg1: i32, %arg2: memref<1x4x16x16xf32, #tpu.memory_space<vmem>>, %arg3: memref<1x48x16xf32, #tpu.memory_space<vmem>>, %arg4: memref<1x16x128xf32, #tpu.memory_space<vmem>>, %arg5: memref<1x4x48x128xbf16, #tpu.memory_space<vmem>>) attributes {dimension_semantics = [#tpu.dimension_semantics<parallel>, #tpu.dimension_semantics<parallel>], iteration_bounds = array<i64: 2, 1>, scalar_prefetch = 0 : i64, scratch_operands = 0 : i64, tpu.core_type = #tpu.core_type<tc>, window_params = [{transform_indices = @transform_0, window_bounds = array<i64: 1, 4, 16, 16>}, {transform_indices = @transform_1, window_bounds = array<i64: 1, 48, 16>}, {transform_indices = @transform_2, window_bounds = array<i64: 1, 16, 128>}, {transform_indices = @transform_3, window_bounds = array<i64: 1, 4, 48, 128>}]} {
    %c0 = arith.constant 0 : index
    %c0_0 = arith.constant 0 : index
    %c0_1 = arith.constant 0 : index
    %0 = vector.load %arg3[%c0, %c0_0, %c0_1] : memref<1x48x16xf32, #tpu.memory_space<vmem>>, vector<1x48x16xf32>
    %1 = vector.shape_cast %0 : vector<1x48x16xf32> to vector<48x16xf32>
    %c0_2 = arith.constant 0 : index
    %c0_3 = arith.constant 0 : index
    %c0_4 = arith.constant 0 : index
    %2 = vector.load %arg4[%c0_2, %c0_3, %c0_4] : memref<1x16x128xf32, #tpu.memory_space<vmem>>, vector<1x16x128xf32>
    %3 = vector.shape_cast %2 : vector<1x16x128xf32> to vector<16x128xf32>
    %c0_5 = arith.constant 0 : index
    %c0_6 = arith.constant 0 : index
    %c0_7 = arith.constant 0 : index
    %c0_8 = arith.constant 0 : index
    %4 = vector.load %arg2[%c0_5, %c0_6, %c0_7, %c0_8] : memref<1x4x16x16xf32, #tpu.memory_space<vmem>>, vector<1x1x16x16xf32>
    %5 = vector.shape_cast %4 : vector<1x1x16x16xf32> to vector<16x16xf32>
    %cst = arith.constant dense<0.000000e+00> : vector<48x16xf32>
    %6 = tpu.matmul %1, %5, %cst {dimension_numbers = #tpu.dot_dimension_numbers<[1], [0], [0], [1], [0, 0, 1, 1], [], []>} : vector<48x16xf32>, vector<16x16xf32>, vector<48x16xf32> -> vector<48x16xf32>
    %cst_9 = arith.constant dense<0.000000e+00> : vector<48x128xf32>
    %7 = tpu.matmul %6, %3, %cst_9 {dimension_numbers = #tpu.dot_dimension_numbers<[1], [0], [0], [1], [0, 0, 1, 1], [], []>} : vector<48x16xf32>, vector<16x128xf32>, vector<48x128xf32> -> vector<48x128xf32>
    %cst_10 = arith.constant 0.000000e+00 : f32
    %8 = vector.broadcast %cst_10 : f32 to vector<48x128xf32>
    %9 = arith.cmpf ogt, %7, %8 : vector<48x128xf32>
    %10 = arith.extui %9 : vector<48x128xi1> to vector<48x128xi32>
    %11 = arith.sitofp %10 : vector<48x128xi32> to vector<48x128xf32>
    %12 = arith.truncf %11 : vector<48x128xf32> to vector<48x128xbf16>
    %c0_11 = arith.constant 0 : index
    %c0_12 = arith.constant 0 : index
    %c0_13 = arith.constant 0 : index
    %c0_14 = arith.constant 0 : index
    %13 = vector.load %arg5[%c0_11, %c0_12, %c0_13, %c0_14] : memref<1x4x48x128xbf16, #tpu.memory_space<vmem>>, vector<1x1x48x128xbf16>
    %14 = vector.shape_cast %13 : vector<1x1x48x128xbf16> to vector<48x128xbf16>
    %15 = vector.shape_cast %12 : vector<48x128xbf16> to vector<1x1x48x128xbf16>
    tpu.vector_store %arg5[%c0_11, %c0_12, %c0_13, %c0_14], %15 {strides = array<i32>} : memref<1x4x48x128xbf16, #tpu.memory_space<vmem>>, vector<1x1x48x128xbf16>,
    %c0_15 = arith.constant 0 : index
    %c1 = arith.constant 1 : index
    %c0_16 = arith.constant 0 : index
    %c0_17 = arith.constant 0 : index
    %16 = vector.load %arg2[%c0_15, %c1, %c0_16, %c0_17] : memref<1x4x16x16xf32, #tpu.memory_space<vmem>>, vector<1x1x16x16xf32>
    %17 = vector.shape_cast %16 : vector<1x1x16x16xf32> to vector<16x16xf32>
    %cst_18 = arith.constant dense<0.000000e+00> : vector<48x16xf32>
    %18 = tpu.matmul %1, %17, %cst_18 {dimension_numbers = #tpu.dot_dimension_numbers<[1], [0], [0], [1], [0, 0, 1, 1], [], []>} : vector<48x16xf32>, vector<16x16xf32>, vector<48x16xf32> -> vector<48x16xf32>
    %cst_19 = arith.constant dense<0.000000e+00> : vector<48x128xf32>
    %19 = tpu.matmul %18, %3, %cst_19 {dimension_numbers = #tpu.dot_dimension_numbers<[1], [0], [0], [1], [0, 0, 1, 1], [], []>} : vector<48x16xf32>, vector<16x128xf32>, vector<48x128xf32> -> vector<48x128xf32>
    %cst_20 = arith.constant 0.000000e+00 : f32
    %20 = vector.broadcast %cst_20 : f32 to vector<48x128xf32>
    %21 = arith.cmpf ogt, %19, %20 : vector<48x128xf32>
    %22 = arith.extui %21 : vector<48x128xi1> to vector<48x128xi32>
    %23 = arith.sitofp %22 : vector<48x128xi32> to vector<48x128xf32>
    %24 = arith.truncf %23 : vector<48x128xf32> to vector<48x128xbf16>
    %c0_21 = arith.constant 0 : index
    %c1_22 = arith.constant 1 : index
    %c0_23 = arith.constant 0 : index
    %c0_24 = arith.constant 0 : index
    %25 = vector.load %arg5[%c0_21, %c1_22, %c0_23, %c0_24] : memref<1x4x48x128xbf16, #tpu.memory_space<vmem>>, vector<1x1x48x128xbf16>
    %26 = vector.shape_cast %25 : vector<1x1x48x128xbf16> to vector<48x128xbf16>
    %27 = vector.shape_cast %24 : vector<48x128xbf16> to vector<1x1x48x128xbf16>
    tpu.vector_store %arg5[%c0_21, %c1_22, %c0_23, %c0_24], %27 {strides = array<i32>} : memref<1x4x48x128xbf16, #tpu.memory_space<vmem>>, vector<1x1x48x128xbf16>,
    %c0_25 = arith.constant 0 : index
    %c2 = arith.constant 2 : index
    %c0_26 = arith.constant 0 : index
    %c0_27 = arith.constant 0 : index
    %28 = vector.load %arg2[%c0_25, %c2, %c0_26, %c0_27] : memref<1x4x16x16xf32, #tpu.memory_space<vmem>>, vector<1x1x16x16xf32>
    %29 = vector.shape_cast %28 : vector<1x1x16x16xf32> to vector<16x16xf32>
    %cst_28 = arith.constant dense<0.000000e+00> : vector<48x16xf32>
    %30 = tpu.matmul %1, %29, %cst_28 {dimension_numbers = #tpu.dot_dimension_numbers<[1], [0], [0], [1], [0, 0, 1, 1], [], []>} : vector<48x16xf32>, vector<16x16xf32>, vector<48x16xf32> -> vector<48x16xf32>
    %cst_29 = arith.constant dense<0.000000e+00> : vector<48x128xf32>
    %31 = tpu.matmul %30, %3, %cst_29 {dimension_numbers = #tpu.dot_dimension_numbers<[1], [0], [0], [1], [0, 0, 1, 1], [], []>} : vector<48x16xf32>, vector<16x128xf32>, vector<48x128xf32> -> vector<48x128xf32>
    %cst_30 = arith.constant 0.000000e+00 : f32
    %32 = vector.broadcast %cst_30 : f32 to vector<48x128xf32>
    %33 = arith.cmpf ogt, %31, %32 : vector<48x128xf32>
    %34 = arith.extui %33 : vector<48x128xi1> to vector<48x128xi32>
    %35 = arith.sitofp %34 : vector<48x128xi32> to vector<48x128xf32>
    %36 = arith.truncf %35 : vector<48x128xf32> to vector<48x128xbf16>
    %c0_31 = arith.constant 0 : index
    %c2_32 = arith.constant 2 : index
    %c0_33 = arith.constant 0 : index
    %c0_34 = arith.constant 0 : index
    %37 = vector.load %arg5[%c0_31, %c2_32, %c0_33, %c0_34] : memref<1x4x48x128xbf16, #tpu.memory_space<vmem>>, vector<1x1x48x128xbf16>
    %38 = vector.shape_cast %37 : vector<1x1x48x128xbf16> to vector<48x128xbf16>
    %39 = vector.shape_cast %36 : vector<48x128xbf16> to vector<1x1x48x128xbf16>
    tpu.vector_store %arg5[%c0_31, %c2_32, %c0_33, %c0_34], %39 {strides = array<i32>} : memref<1x4x48x128xbf16, #tpu.memory_space<vmem>>, vector<1x1x48x128xbf16>,
    %c0_35 = arith.constant 0 : index
    %c3 = arith.constant 3 : index
    %c0_36 = arith.constant 0 : index
    %c0_37 = arith.constant 0 : index
    %40 = vector.load %arg2[%c0_35, %c3, %c0_36, %c0_37] : memref<1x4x16x16xf32, #tpu.memory_space<vmem>>, vector<1x1x16x16xf32>
    %41 = vector.shape_cast %40 : vector<1x1x16x16xf32> to vector<16x16xf32>
    %cst_38 = arith.constant dense<0.000000e+00> : vector<48x16xf32>
    %42 = tpu.matmul %1, %41, %cst_38 {dimension_numbers = #tpu.dot_dimension_numbers<[1], [0], [0], [1], [0, 0, 1, 1], [], []>} : vector<48x16xf32>, vector<16x16xf32>, vector<48x16xf32> -> vector<48x16xf32>
    %cst_39 = arith.constant dense<0.000000e+00> : vector<48x128xf32>
    %43 = tpu.matmul %42, %3, %cst_39 {dimension_numbers = #tpu.dot_dimension_numbers<[1], [0], [0], [1], [0, 0, 1, 1], [], []>} : vector<48x16xf32>, vector<16x128xf32>, vector<48x128xf32> -> vector<48x128xf32>
    %cst_40 = arith.constant 0.000000e+00 : f32
    %44 = vector.broadcast %cst_40 : f32 to vector<48x128xf32>
    %45 = arith.cmpf ogt, %43, %44 : vector<48x128xf32>
    %46 = arith.extui %45 : vector<48x128xi1> to vector<48x128xi32>
    %47 = arith.sitofp %46 : vector<48x128xi32> to vector<48x128xf32>
    %48 = arith.truncf %47 : vector<48x128xf32> to vector<48x128xbf16>
    %c0_41 = arith.constant 0 : index
    %c3_42 = arith.constant 3 : index
    %c0_43 = arith.constant 0 : index
    %c0_44 = arith.constant 0 : index
    %49 = vector.load %arg5[%c0_41, %c3_42, %c0_43, %c0_44] : memref<1x4x48x128xbf16, #tpu.memory_space<vmem>>, vector<1x1x48x128xbf16>
    %50 = vector.shape_cast %49 : vector<1x1x48x128xbf16> to vector<48x128xbf16>
    %51 = vector.shape_cast %48 : vector<48x128xbf16> to vector<1x1x48x128xbf16>
    tpu.vector_store %arg5[%c0_41, %c3_42, %c0_43, %c0_44], %51 {strides = array<i32>} : memref<1x4x48x128xbf16, #tpu.memory_space<vmem>>, vector<1x1x48x128xbf16>,
    return
  }
  func.func @transform_0(%arg0: i32, %arg1: i32) -> (i32, i32, i32, i32) {
    %c0_i32 = arith.constant 0 : i32
    %c0_i32_0 = arith.constant 0 : i32
    %c0_i32_1 = arith.constant 0 : i32
    return %arg0, %arg1, %c0_i32, %c0_i32_0 : i32, i32, i32, i32
  }
  func.func @transform_1(%arg0: i32, %arg1: i32) -> (i32, i32, i32) {
    %c0_i32 = arith.constant 0 : i32
    %c0_i32_0 = arith.constant 0 : i32
    %c0_i32_1 = arith.constant 0 : i32
    return %arg0, %c0_i32, %c0_i32_0 : i32, i32, i32
  }
  func.func @transform_2(%arg0: i32, %arg1: i32) -> (i32, i32, i32) {
    %c0_i32 = arith.constant 0 : i32
    %c0_i32_0 = arith.constant 0 : i32
    %c0_i32_1 = arith.constant 0 : i32
    return %arg0, %c0_i32, %c0_i32_0 : i32, i32, i32
  }
  func.func @transform_3(%arg0: i32, %arg1: i32) -> (i32, i32, i32, i32) {
    %c0_i32 = arith.constant 0 : i32
    %c0_i32_0 = arith.constant 0 : i32
    %c0_i32_1 = arith.constant 0 : i32
    return %arg0, %arg1, %c0_i32, %c0_i32_0 : i32, i32, i32, i32
  }
}

</mosaic_0001>

<llo_original>
// kernel: tpu_custom_call.1
$region0: #{tpu_custom_call.1}
  #allocation0 [shape = 'u32[]', space=smem, size = 0x4, offset = 0x4, fixed_abs, tag = 'smem constant byte address 0x4 - core index']
  #allocation1 [shape = 'u32[144,128]{1,0:T(1,128)}', space=vmem, size = 0x12000, scoped, tag = 'internal scratch']
  %s0 = inlined_call_operand.vmem [shape: f32[2,4,16,16], index: 0, kind: input, shape index: {}]
  %s1 = inlined_call_operand.vmem [shape: f32[2,48,16], index: 1, kind: input, shape index: {}]
  %s2 = inlined_call_operand.hbm [shape: f32[2,16,128], index: 2, kind: input, shape index: {}]
  %s3 = inlined_call_operand.hbm [shape: bf16[2,4,48,128], index: 3, kind: output, shape index: {}]
  %s4 = sld [smem:[#allocation0]]
  $region49: #{tpu_custom_call.1} parent=0
    _
  %s6 = ssub.s32 1, %s4
  %s7 = scalar_select 0, %s6, %s4
  $region1: #{tpu_custom_call.1} parent=0
    #allocation2 [shape = 'u8[16384]{0}', space=vmem, size = 0x4000, scoped, tag = 'input window, operand 2']
    #allocation3 [shape = 's32[2]{0}', space=sflag, size = 0x8, scoped, tag = 'scoped memory for tpu_custom_call.1']
    #allocation4 [shape = 's32[2]{0}', space=sflag, size = 0x8, scoped, tag = 'scoped memory for tpu_custom_call.1']
    #allocation5 [shape = 'u8[98304]{0}', space=vmem, size = 0x18000, scoped, tag = 'output window, operand 0']
    %8 = vsyncpa [#allocation3], 0
    %s9 = scalar_lea.sflag [#allocation3], 1
    %10 = vsyncpa %s9, 0
    %11 = vsyncpa [#allocation4], 0
    %s12 = scalar_lea.sflag [#allocation4], 1
    %13 = vsyncpa %s12, 0
    loop: start=0, step=1, limit=4
    $region2: #{tpu_custom_call.1} parent=1 // loop_pre_header
      _
    $region3: #{tpu_custom_call.1} parent=1 // loop_header
      %s15 = sphi 0, %s19
      %p16 = scmp.ge.s32.totalorder %s15, 4
      %s22 = sphi 0, %s34
      %s23 = sphi 0, %s30
      %s24 = sphi 0, %s22
      %s25 = sphi 0, %s23
      %s26 = sphi 0, %s24
      %s27 = sphi 0, %s25
      %s39 = sphi 0, %s41
      %s42 = sphi 0, %s39
      %s43 = sphi 0, %s42
      %s59 = sphi 0, %s43
      %s65 = sphi 0, %s67
      %s68 = sphi 0, %s65
      %s69 = sphi 0, %s68
      %s85 = sphi 0, %s69
      %s91 = sphi 0, %s93
      %s94 = sphi 0, %s91
      %s95 = sphi 0, %s94
      %s111 = sphi 0, %s95
      %s119 = sphi 0, %s121
      %s122 = sphi 0, %s119
      %s123 = sphi 0, %s122
      %s139 = sphi 0, %s123
    $region4: #{tpu_custom_call.1} parent=1 // loop_header_branch
      %18 = sbr.rel (%p16) target = $region8
    $region5: #{tpu_custom_call.1} parent=1 // loop_body
      %s20 = ssub.s32 %s15, 1
      %s21 = ssub.s32 %s15, 2
      %s28 = sadd.s32 1, %s23
      %p29 = scmp.ge.s32.totalorder %s28, 1
      %s30 = scalar_select %p29, 0, %s28
      %s31 = sadd.s32 1, %s22
      %s32 = scalar_select %p29, %s31, %s22
      %p33 = scmp.ge.s32.totalorder %s32, 2
      %s34 = scalar_select %p33, 0, %s32
      %s35 = ssub.s32 %s22, %s34
      %s36 = ssub.s32 %s23, %s30
      %s37 = sor.u32 %s35, %s36
      %p38 = scmp.eq.s32.totalorder %s37, 0
      %s40 = sadd.s32 %s39, 1
      %s41 = scalar_select %p38, %s39, %s40
      %p44 = pneg %p38
      %p45 = scmp.eq.s32.totalorder %s15, 1
      %p46 = por %p44, %p45
      %p47 = scmp.ne.s32.totalorder %s39, %s42
      %p48 = scmp.eq.s32.totalorder %s15, 0
      %p49 = por %p47, %p48
      %p50 = scmp.ne.s32.totalorder %s39, %s42
      %p51 = scmp.eq.s32.totalorder %s20, 1
      %p52 = por %p50, %p51
      %p53 = scmp.ne.s32.totalorder %s42, %s43
      %p54 = scmp.eq.s32.totalorder %s20, 0
      %p55 = por %p53, %p54
      %p56 = scmp.ne.s32.totalorder %s42, %s43
      %p57 = scmp.eq.s32.totalorder %s21, 1
      %p58 = por %p56, %p57
      %p60 = scmp.ne.s32.totalorder %s43, %s59
      %p61 = scmp.eq.s32.totalorder %s21, 0
      %p62 = por %p60, %p61
      %s63 = ssub.s32 %s22, %s34
      %p64 = scmp.eq.s32.totalorder %s63, 0
      %s66 = sadd.s32 %s65, 1
      %s67 = scalar_select %p64, %s65, %s66
      %p70 = pneg %p64
      %p71 = scmp.eq.s32.totalorder %s15, 1
      %p72 = por %p70, %p71
      %p73 = scmp.ne.s32.totalorder %s65, %s68
      %p74 = scmp.eq.s32.totalorder %s15, 0
      %p75 = por %p73, %p74
      %p76 = scmp.ne.s32.totalorder %s65, %s68
      %p77 = scmp.eq.s32.totalorder %s20, 1
      %p78 = por %p76, %p77
      %p79 = scmp.ne.s32.totalorder %s68, %s69
      %p80 = scmp.eq.s32.totalorder %s20, 0
      %p81 = por %p79, %p80
      %p82 = scmp.ne.s32.totalorder %s68, %s69
      %p83 = scmp.eq.s32.totalorder %s21, 1
      %p84 = por %p82, %p83
      %p86 = scmp.ne.s32.totalorder %s69, %s85
      %p87 = scmp.eq.s32.totalorder %s21, 0
      %p88 = por %p86, %p87
      %s89 = ssub.s32 %s22, %s34
      %p90 = scmp.eq.s32.totalorder %s89, 0
      %s92 = sadd.s32 %s91, 1
      %s93 = scalar_select %p90, %s91, %s92
      %p96 = pneg %p90
      %p97 = scmp.eq.s32.totalorder %s15, 1
      %p98 = por %p96, %p97
      %p99 = scmp.ne.s32.totalorder %s91, %s94
      %p100 = scmp.eq.s32.totalorder %s15, 0
      %p101 = por %p99, %p100
      %p102 = scmp.ne.s32.totalorder %s91, %s94
      %p103 = scmp.eq.s32.totalorder %s20, 1
      %p104 = por %p102, %p103
      %p105 = scmp.ne.s32.totalorder %s94, %s95
      %p106 = scmp.eq.s32.totalorder %s20, 0
      %p107 = por %p105, %p106
      %p108 = scmp.ne.s32.totalorder %s94, %s95
      %p109 = scmp.eq.s32.totalorder %s21, 1
      %p110 = por %p108, %p109
      %p112 = scmp.ne.s32.totalorder %s95, %s111
      %p113 = scmp.eq.s32.totalorder %s21, 0
      %p114 = por %p112, %p113
      %s115 = ssub.s32 %s22, %s34
      %s116 = ssub.s32 %s23, %s30
      %s117 = sor.u32 %s115, %s116
      %p118 = scmp.eq.s32.totalorder %s117, 0
      %s120 = sadd.s32 %s119, 1
      %s121 = scalar_select %p118, %s119, %s120
      %p124 = pneg %p118
      %p125 = scmp.eq.s32.totalorder %s15, 1
      %p126 = por %p124, %p125
      %p127 = scmp.ne.s32.totalorder %s119, %s122
      %p128 = scmp.eq.s32.totalorder %s15, 0
      %p129 = por %p127, %p128
      %p130 = scmp.ne.s32.totalorder %s119, %s122
      %p131 = scmp.eq.s32.totalorder %s20, 1
      %p132 = por %p130, %p131
      %p133 = scmp.ne.s32.totalorder %s122, %s123
      %p134 = scmp.eq.s32.totalorder %s20, 0
      %p135 = por %p133, %p134
      %p136 = scmp.ne.s32.totalorder %s122, %s123
      %p137 = scmp.eq.s32.totalorder %s21, 1
      %p138 = por %p136, %p137
      %p140 = scmp.ne.s32.totalorder %s123, %s139
      %p141 = scmp.eq.s32.totalorder %s21, 0
      %p142 = por %p140, %p141
      %p143 = scmp.le.s32.totalorder 1, %s15
      %p144 = scmp.lt.s32.totalorder %s15, 3
      %p145 = pnand %p143, %p144
      %p146 = pneg %p145
      // Predicated region
      $region9: #{tpu_custom_call.1} parent=5 // pred_check
        _
      $region10: #{tpu_custom_call.1} parent=5 // pred_check_branch
        %148 = sbr.rel (%p145) target = $region12
      $region11: #{tpu_custom_call.1} parent=5 // pred_region
        %s149 = ssub.s32 %s15, 1
      $region12: #{tpu_custom_call.1} parent=5 // pred_fallthru
        _
      %p150 = scmp.lt.s32.totalorder %s15, 2
      // Predicated region
      $region13: #{tpu_custom_call.1} parent=5 // pred_check
        %p151 = pneg %p150
      $region14: #{tpu_custom_call.1} parent=5 // pred_check_branch
        %153 = sbr.rel (%p151) target = $region16
      $region15: #{tpu_custom_call.1} parent=5 // pred_region
        // Predicated region
        $region17: #{tpu_custom_call.1} parent=15 // pred_check
          %p154 = pneg %p49
        $region18: #{tpu_custom_call.1} parent=15 // pred_check_branch
          %156 = sbr.rel (%p154) target = $region20
        $region19: #{tpu_custom_call.1} parent=15 // pred_region
          %s157 = smul.u32 4, %s23
          %p158 = scmp.lt.s32.totalorder %s22, 1
          %s159 = scalar_select %p158, %s22, 1
          %p160 = scmp.lt.s32.totalorder %s157, 3
          %s161 = scalar_select %p160, %s157, 3
          %s162 = smul.addr %s161, 2
          %s163 = smul.addr %s159, 8
          %s164 = sadd.s32 %s162, %s163
          %s165 = smul.addr %s164, 8
          %s166 = scalar_lea.vmem %s0, %s165
          %s167 = smul.u32 4, %s23
        $region20: #{tpu_custom_call.1} parent=15 // pred_fallthru
          _
        // Predicated region
        $region21: #{tpu_custom_call.1} parent=15 // pred_check
          %p168 = pneg %p75
        $region22: #{tpu_custom_call.1} parent=15 // pred_check_branch
          %170 = sbr.rel (%p168) target = $region24
        $region23: #{tpu_custom_call.1} parent=15 // pred_region
          %p171 = scmp.lt.s32.totalorder %s22, 1
          %s172 = scalar_select %p171, %s22, 1
          %s173 = smul.addr %s172, 6
          %s174 = smul.addr %s173, 8
          %s175 = scalar_lea.vmem %s1, %s174
        $region24: #{tpu_custom_call.1} parent=15 // pred_fallthru
          _
        // Predicated region
        $region25: #{tpu_custom_call.1} parent=15 // pred_check
          %p176 = pneg %p101
        $region26: #{tpu_custom_call.1} parent=15 // pred_check_branch
          %178 = sbr.rel (%p176) target = $region28
        $region27: #{tpu_custom_call.1} parent=15 // pred_region
          %s179 = sand.u32 %s91, 1
          %s180 = scalar_lea.sflag [#allocation3], %s179
          %s181 = sand.u32 %s91, 1
          %s182 = smul.addr %s181, 16
          %s183 = scalar_lea.vmem [#allocation2], %s182
          %s185 = ssub.s32 256, 256
          %186 = vsyncadd %s180, %s185
          %s187 = smul.addr %s22, 2
          %s188 = smul.addr %s187, 128
          %s189 = scalar_lea.hbm %s2, %s188
          %s190 = sshll.u32 %s183, 4
          %s191 = int_to_ptr.vmem [resolvable:$true] %s190
          %196 = dma.hbm_to_vmem [thread:$0]  %s189, 256, %s191, %s180, 128, 128, 8
        $region28: #{tpu_custom_call.1} parent=15 // pred_fallthru
          _
      $region16: #{tpu_custom_call.1} parent=5 // pred_fallthru
        _
      %p197 = scmp.le.s32.totalorder 1, %s15
      %p198 = scmp.lt.s32.totalorder %s15, 3
      %p199 = pnand %p197, %p198
      %p200 = pneg %p199
      // Predicated region
      $region29: #{tpu_custom_call.1} parent=5 // pred_check
        _
      $region30: #{tpu_custom_call.1} parent=5 // pred_check_branch
        %202 = sbr.rel (%p199) target = $region32
      $region31: #{tpu_custom_call.1} parent=5 // pred_region
        %s203 = ssub.s32 %s15, 1
        %s204 = sand.u32 %s94, 1
        %s205 = scalar_lea.sflag [#allocation3], %s204
        %s206 = sand.u32 %s94, 1
        %s207 = smul.addr %s206, 16
        %s208 = scalar_lea.vmem [#allocation2], %s207
        // Predicated region
        $region33: #{tpu_custom_call.1} parent=31 // pred_check
          %p209 = pneg %p107
        $region34: #{tpu_custom_call.1} parent=31 // pred_check_branch
          %211 = sbr.rel (%p209) target = $region36
        $region35: #{tpu_custom_call.1} parent=31 // pred_region
          %212 = dma.done %s205, 256
        $region36: #{tpu_custom_call.1} parent=31 // pred_fallthru
          _
        %s213 = smul.u32 4, %s25
        %p214 = scmp.lt.s32.totalorder %s24, 1
        %s215 = scalar_select %p214, %s24, 1
        %p216 = scmp.lt.s32.totalorder %s213, 3
        %s217 = scalar_select %p216, %s213, 3
        %s218 = smul.addr %s217, 2
        %s219 = smul.addr %s215, 8
        %s220 = sadd.s32 %s218, %s219
        %s221 = smul.addr %s220, 8
        %s222 = scalar_lea.vmem %s0, %s221
        %p223 = pneg %p55
        %p224 = pneg %p52
        %p225 = scmp.lt.s32.totalorder %s24, 1
        %s226 = scalar_select %p225, %s24, 1
        %s227 = smul.addr %s226, 6
        %s228 = smul.addr %s227, 8
        %s229 = scalar_lea.vmem %s1, %s228
        %p230 = pneg %p81
        %p231 = pneg %p78
        %s232 = sand.u32 %s94, 1
        %s233 = scalar_lea.sflag [#allocation3], %s232
        %s234 = sand.u32 %s94, 1
        %s235 = smul.addr %s234, 16
        %s236 = scalar_lea.vmem [#allocation2], %s235
        %p237 = pneg %p107
        %p238 = pneg %p104
        %p239 = pneg %p135
        %p240 = pneg %p132
        %s241 = sand.u32 %s122, 1
        %s242 = scalar_lea.sflag [#allocation4], %s241
        %s243 = sand.u32 %s122, 1
        %s244 = smul.addr %s243, 96
        %s245 = scalar_lea.vmem [#allocation5], %s244
        %s246 = smul.u32 4, %s25
        %p247 = scmp.lt.s32.totalorder %s24, 1
        %s248 = scalar_select %p247, %s24, 1
        %p249 = scmp.lt.s32.totalorder %s246, 3
        %s250 = scalar_select %p249, %s246, 3
        %s251 = smul.addr %s250, 2
        %s252 = smul.addr %s248, 8
        %s253 = sadd.s32 %s251, %s252
        %s254 = smul.addr %s253, 8
        %s255 = scalar_lea.vmem %s0, %s254
        %s256 = smul.u32 4, %s25
        %p257 = scmp.lt.s32.totalorder %s24, 1
        %s258 = scalar_select %p257, %s24, 1
        %s259 = smul.addr %s258, 6
        %s260 = smul.addr %s259, 8
        %s261 = scalar_lea.vmem %s1, %s260
        %s262 = smul.u32 4, %s25
        %v263 = vld [vmem:[%s261] sm:$0xff]
        %v264 = vld [vmem:[%s261 + $0x8] sm:$0xff]
        %v265 = vld [vmem:[%s261 + $0x10] sm:$0xff]
        %v266 = vld [vmem:[%s261 + $0x18] sm:$0xff]
        %v267 = vld [vmem:[%s261 + $0x20] sm:$0xff]
        %v268 = vld [vmem:[%s261 + $0x28] sm:$0xff]
        %v269 = vld [vmem:[%s208] sm:$0xff]
        %v270 = vld [vmem:[%s208 + $0x8] sm:$0xff]
        %v271 = vld [vmem:[%s255] sm:$0xff]
        %v272 = vld [vmem:[%s255 + $0x8] sm:$0xff]
        %vm273 = vcmask 130048
        %v275 = vsel %vm273, %v263, 0
        %v278 = vsel %vm273, %v264, 0
        %v281 = vsel %vm273, %v265, 0
        %v284 = vsel %vm273, %v266, 0
        %v287 = vsel %vm273, %v267, 0
        %v290 = vsel %vm273, %v268, 0
        %292 = vmatprep.subr.mxu0 0.0
        %293 = vmatpush1.msra.mxu0 %v271
        %294 = vmatprep.subr.mxu0 0.0
        %295 = vmatpush1.msra.mxu0 %v272
        %296 = vmatprep.subr.mxu0 0.0
        %297 = vmatpush1.msra.mxu0 0.0
        %298 = vmatprep.subr.mxu0 0.0
        %299 = vmatpush1.msra.mxu0 0.0
        %300 = vmatprep.subr.mxu0 0.0
        %301 = vmatpush1.msra.mxu0 0.0
        %302 = vmatprep.subr.mxu0 0.0
        %303 = vmatpush1.msra.mxu0 0.0
        %304 = vmatprep.subr.mxu0 0.0
        %305 = vmatpush1.msra.mxu0 0.0
        %306 = vmatprep.subr.mxu0 0.0
        %307 = vmatpush1.msra.mxu0 0.0
        %308 = vmatprep.subr.mxu0 0.0
        %309 = vmatpush1.msra.mxu0 0.0
        %310 = vmatprep.subr.mxu0 0.0
        %311 = vmatpush1.msra.mxu0 0.0
        %312 = vmatprep.subr.mxu0 0.0
        %313 = vmatpush1.msra.mxu0 0.0
        %314 = vmatprep.subr.mxu0 0.0
        %315 = vmatpush1.msra.mxu0 0.0
        %316 = vmatprep.subr.mxu0 0.0
        %317 = vmatpush1.msra.mxu0 0.0
        %318 = vmatprep.subr.mxu0 0.0
        %319 = vmatpush1.msra.mxu0 0.0
        %320 = vmatprep.subr.mxu0 0.0
        %321 = vmatpush1.msra.mxu0 0.0
        %322 = vmatprep.subr.mxu0 0.0
        %323 = vmatpush1.msra.mxu0 0.0
        %324 = vmatprep.subr.mxu0 0.0
        %325 = vmatpush1.msra.mxu0 0.0
        %326 = vmatprep.subr.mxu0 0.0
        %327 = vmatpush1.msra.mxu0 0.0
        %328 = vmatprep.subr.mxu0 0.0
        %329 = vmatpush1.msra.mxu0 0.0
        %330 = vmatprep.subr.mxu0 0.0
        %331 = vmatpush1.msra.mxu0 0.0
        %332 = vmatprep.subr.mxu0 0.0
        %333 = vmatpush1.msra.mxu0 0.0
        %334 = vmatprep.subr.mxu0 0.0
        %335 = vmatpush1.msra.mxu0 0.0
        %336 = vmatprep.subr.mxu0 0.0
        %337 = vmatpush1.msra.mxu0 0.0
        %338 = vmatprep.subr.mxu0 0.0
        %339 = vmatpush1.msra.mxu0 0.0
        %340 = vmatprep.subr.mxu0 0.0
        %341 = vmatpush1.msra.mxu0 0.0
        %342 = vmatprep.subr.mxu0 0.0
        %343 = vmatpush1.msra.mxu0 0.0
        %344 = vmatprep.subr.mxu0 0.0
        %345 = vmatpush1.msra.mxu0 0.0
        %346 = vmatprep.subr.mxu0 0.0
        %347 = vmatpush1.msra.mxu0 0.0
        %348 = vmatprep.subr.mxu0 0.0
        %349 = vmatpush1.msra.mxu0 0.0
        %350 = vmatprep.subr.mxu0 0.0
        %351 = vmatpush1.msra.mxu0 0.0
        %352 = vmatprep.subr.mxu0 0.0
        %353 = vmatpush1.msra.mxu0 0.0
        %354 = vmatprep.subr.mxu0 0.0
        %355 = vmatpush1.msra.mxu0 0.0
        %356 = vmatprep.mubr.f32.mxu0 0.0
        %357 = vmatmul.mubr.f32.gmra.mrb[0].mxu0 %v275
        %v358 = vpop.f32.mrb[0].mxu0
        %v359 = vadd.f32 0.0, %v358
        %v360 = vpop.f32.mrb[0].mxu0
        %361 = vmatprep.mubr.f32.mxu0 0.0
        %362 = vmatmul.mubr.f32.gmra.mrb[0].mxu0 %v278
        %v363 = vpop.f32.mrb[0].mxu0
        %v364 = vadd.f32 0.0, %v363
        %v365 = vpop.f32.mrb[0].mxu0
        %366 = vmatprep.mubr.f32.mxu0 0.0
        %367 = vmatmul.mubr.f32.gmra.mrb[0].mxu0 %v281
        %v368 = vpop.f32.mrb[0].mxu0
        %v369 = vadd.f32 0.0, %v368
        %v370 = vpop.f32.mrb[0].mxu0
        %371 = vmatprep.mubr.f32.mxu0 0.0
        %372 = vmatmul.mubr.f32.gmra.mrb[0].mxu0 %v284
        %v373 = vpop.f32.mrb[0].mxu0
        %v374 = vadd.f32 0.0, %v373
        %v375 = vpop.f32.mrb[0].mxu0
        %376 = vmatprep.mubr.f32.mxu0 0.0
        %377 = vmatmul.mubr.f32.gmra.mrb[0].mxu0 %v287
        %v378 = vpop.f32.mrb[0].mxu0
        %v379 = vadd.f32 0.0, %v378
        %v380 = vpop.f32.mrb[0].mxu0
        %381 = vmatprep.mubr.f32.mxu0 0.0
        %382 = vmatmul.mubr.f32.gmra.mrb[0].mxu0 %v290
        %v383 = vpop.f32.mrb[0].mxu0
        %v384 = vadd.f32 0.0, %v383
        %v385 = vpop.f32.mrb[0].mxu0
        %386 = vdwg.mxu0
        %v388 = vsel %vm273, %v359, 0
        %v391 = vsel %vm273, %v364, 0
        %v394 = vsel %vm273, %v369, 0
        %v397 = vsel %vm273, %v374, 0
        %v400 = vsel %vm273, %v379, 0
        %v403 = vsel %vm273, %v384, 0
        %405 = vmatprep.subr.mxu0 0.0
        %406 = vmatpush1.msra.mxu0 %v269
        %407 = vmatprep.subr.mxu0 0.0
        %408 = vmatpush1.msra.mxu0 %v270
        %409 = vmatprep.subr.mxu0 0.0
        %410 = vmatpush1.msra.mxu0 0.0
        %411 = vmatprep.subr.mxu0 0.0
        %412 = vmatpush1.msra.mxu0 0.0
        %413 = vmatprep.subr.mxu0 0.0
        %414 = vmatpush1.msra.mxu0 0.0
        %415 = vmatprep.subr.mxu0 0.0
        %416 = vmatpush1.msra.mxu0 0.0
        %417 = vmatprep.subr.mxu0 0.0
        %418 = vmatpush1.msra.mxu0 0.0
        %419 = vmatprep.subr.mxu0 0.0
        %420 = vmatpush1.msra.mxu0 0.0
        %421 = vmatprep.subr.mxu0 0.0
        %422 = vmatpush1.msra.mxu0 0.0
        %423 = vmatprep.subr.mxu0 0.0
        %424 = vmatpush1.msra.mxu0 0.0
        %425 = vmatprep.subr.mxu0 0.0
        %426 = vmatpush1.msra.mxu0 0.0
        %427 = vmatprep.subr.mxu0 0.0
        %428 = vmatpush1.msra.mxu0 0.0
        %429 = vmatprep.subr.mxu0 0.0
        %430 = vmatpush1.msra.mxu0 0.0
        %431 = vmatprep.subr.mxu0 0.0
        %432 = vmatpush1.msra.mxu0 0.0
        %433 = vmatprep.subr.mxu0 0.0
        %434 = vmatpush1.msra.mxu0 0.0
        %435 = vmatprep.subr.mxu0 0.0
        %436 = vmatpush1.msra.mxu0 0.0
        %437 = vmatprep.subr.mxu0 0.0
        %438 = vmatpush1.msra.mxu0 0.0
        %439 = vmatprep.subr.mxu0 0.0
        %440 = vmatpush1.msra.mxu0 0.0
        %441 = vmatprep.subr.mxu0 0.0
        %442 = vmatpush1.msra.mxu0 0.0
        %443 = vmatprep.subr.mxu0 0.0
        %444 = vmatpush1.msra.mxu0 0.0
        %445 = vmatprep.subr.mxu0 0.0
        %446 = vmatpush1.msra.mxu0 0.0
        %447 = vmatprep.subr.mxu0 0.0
        %448 = vmatpush1.msra.mxu0 0.0
        %449 = vmatprep.subr.mxu0 0.0
        %450 = vmatpush1.msra.mxu0 0.0
        %451 = vmatprep.subr.mxu0 0.0
        %452 = vmatpush1.msra.mxu0 0.0
        %453 = vmatprep.subr.mxu0 0.0
        %454 = vmatpush1.msra.mxu0 0.0
        %455 = vmatprep.subr.mxu0 0.0
        %456 = vmatpush1.msra.mxu0 0.0
        %457 = vmatprep.subr.mxu0 0.0
        %458 = vmatpush1.msra.mxu0 0.0
        %459 = vmatprep.subr.mxu0 0.0
        %460 = vmatpush1.msra.mxu0 0.0
        %461 = vmatprep.subr.mxu0 0.0
        %462 = vmatpush1.msra.mxu0 0.0
        %463 = vmatprep.subr.mxu0 0.0
        %464 = vmatpush1.msra.mxu0 0.0
        %465 = vmatprep.subr.mxu0 0.0
        %466 = vmatpush1.msra.mxu0 0.0
        %467 = vmatprep.subr.mxu0 0.0
        %468 = vmatpush1.msra.mxu0 0.0
        %469 = vmatprep.mubr.f32.mxu0 0.0
        %470 = vmatmul.mubr.f32.gmra.mrb[0].mxu0 %v388
        %v471 = vpop.f32.mrb[0].mxu0
        %v472 = vadd.f32 0.0, %v471
        %v473 = vpop.f32.mrb[0].mxu0
        %474 = vmatprep.mubr.f32.mxu0 0.0
        %475 = vmatmul.mubr.f32.gmra.mrb[0].mxu0 %v391
        %v476 = vpop.f32.mrb[0].mxu0
        %v477 = vadd.f32 0.0, %v476
        %v478 = vpop.f32.mrb[0].mxu0
        %479 = vmatprep.mubr.f32.mxu0 0.0
        %480 = vmatmul.mubr.f32.gmra.mrb[0].mxu0 %v394
        %v481 = vpop.f32.mrb[0].mxu0
        %v482 = vadd.f32 0.0, %v481
        %v483 = vpop.f32.mrb[0].mxu0
        %484 = vmatprep.mubr.f32.mxu0 0.0
        %485 = vmatmul.mubr.f32.gmra.mrb[0].mxu0 %v397
        %v486 = vpop.f32.mrb[0].mxu0
        %v487 = vadd.f32 0.0, %v486
        %v488 = vpop.f32.mrb[0].mxu0
        %489 = vmatprep.mubr.f32.mxu0 0.0
        %490 = vmatmul.mubr.f32.gmra.mrb[0].mxu0 %v400
        %v491 = vpop.f32.mrb[0].mxu0
        %v492 = vadd.f32 0.0, %v491
        %v493 = vpop.f32.mrb[0].mxu0
        %494 = vmatprep.mubr.f32.mxu0 0.0
        %495 = vmatmul.mubr.f32.gmra.mrb[0].mxu0 %v403
        %v496 = vpop.f32.mrb[0].mxu0
        %v497 = vadd.f32 0.0, %v496
        %v498 = vpop.f32.mrb[0].mxu0
        %499 = vdwg.mxu0
        %vm500 = vcmp.gt.f32.partialorder %v472, 0.0
        %vm501 = vcmp.gt.f32.partialorder %v477, 0.0
        %vm502 = vcmp.gt.f32.partialorder %v482, 0.0
        %vm503 = vcmp.gt.f32.partialorder %v487, 0.0
        %vm504 = vcmp.gt.f32.partialorder %v492, 0.0
        %vm505 = vcmp.gt.f32.partialorder %v497, 0.0
        %v506 = vsel %vm500, 1, 0
        %v507 = vsel %vm501, 1, 0
        %v508 = vsel %vm502, 1, 0
        %v509 = vsel %vm503, 1, 0
        %v510 = vsel %vm504, 1, 0
        %v511 = vsel %vm505, 1, 0
        %v512 = vcvt.s32.f32 %v506
        %v513 = vcvt.s32.f32 %v507
        %v514 = vcvt.s32.f32 %v508
        %v515 = vcvt.s32.f32 %v509
        %v516 = vcvt.s32.f32 %v510
        %v517 = vcvt.s32.f32 %v511
        %v518 = vpack.c.bf16 %v513, %v512
        %v519 = vpack.c.bf16 %v515, %v514
        %v520 = vpack.c.bf16 %v517, %v516
        %v524 = vunpack.c.l.b16 %v518
        %v525 = vunpack.c.h.b16 %v518
        %v526 = vunpack.c.l.b16 %v519
        %v527 = vunpack.c.h.b16 %v519
        %v528 = vunpack.c.l.b16 %v520
        %v529 = vunpack.c.h.b16 %v520
        %v530 = vpack.c.b16 %v524, %v524
        %v531 = vpack.c.b16 %v525, %v525
        %v532 = vpack.c.b16 %v526, %v526
        %v533 = vpack.c.b16 %v527, %v527
        %v534 = vpack.c.b16 %v528, %v528
        %v535 = vpack.c.b16 %v529, %v529
        %542 = vst [vmem:[%s245] sm:$0xf] %v530
        %543 = vst [vmem:[%s245 + $0x4] sm:$0xf] %v531
        %544 = vst [vmem:[%s245 + $0x8] sm:$0xf] %v532
        %545 = vst [vmem:[%s245 + $0xc] sm:$0xf] %v533
        %546 = vst [vmem:[%s245 + $0x10] sm:$0xf] %v534
        %547 = vst [vmem:[%s245 + $0x14] sm:$0xf] %v535
        %s548 = scalar_lea.vmem %s255, 16
        %v549 = vld [vmem:[%s548] sm:$0xff]
        %v550 = vld [vmem:[%s548 + $0x8] sm:$0xff]
        %551 = vmatprep.subr.mxu0 0.0
        %552 = vmatpush1.msra.mxu0 %v549
        %553 = vmatprep.subr.mxu0 0.0
        %554 = vmatpush1.msra.mxu0 %v550
        %555 = vmatprep.subr.mxu0 0.0
        %556 = vmatpush1.msra.mxu0 0.0
        %557 = vmatprep.subr.mxu0 0.0
        %558 = vmatpush1.msra.mxu0 0.0
        %559 = vmatprep.subr.mxu0 0.0
        %560 = vmatpush1.msra.mxu0 0.0
        %561 = vmatprep.subr.mxu0 0.0
        %562 = vmatpush1.msra.mxu0 0.0
        %563 = vmatprep.subr.mxu0 0.0
        %564 = vmatpush1.msra.mxu0 0.0
        %565 = vmatprep.subr.mxu0 0.0
        %566 = vmatpush1.msra.mxu0 0.0
        %567 = vmatprep.subr.mxu0 0.0
        %568 = vmatpush1.msra.mxu0 0.0
        %569 = vmatprep.subr.mxu0 0.0
        %570 = vmatpush1.msra.mxu0 0.0
        %571 = vmatprep.subr.mxu0 0.0
        %572 = vmatpush1.msra.mxu0 0.0
        %573 = vmatprep.subr.mxu0 0.0
        %574 = vmatpush1.msra.mxu0 0.0
        %575 = vmatprep.subr.mxu0 0.0
        %576 = vmatpush1.msra.mxu0 0.0
        %577 = vmatprep.subr.mxu0 0.0
        %578 = vmatpush1.msra.mxu0 0.0
        %579 = vmatprep.subr.mxu0 0.0
        %580 = vmatpush1.msra.mxu0 0.0
        %581 = vmatprep.subr.mxu0 0.0
        %582 = vmatpush1.msra.mxu0 0.0
        %583 = vmatprep.subr.mxu0 0.0
        %584 = vmatpush1.msra.mxu0 0.0
        %585 = vmatprep.subr.mxu0 0.0
        %586 = vmatpush1.msra.mxu0 0.0
        %587 = vmatprep.subr.mxu0 0.0
        %588 = vmatpush1.msra.mxu0 0.0
        %589 = vmatprep.subr.mxu0 0.0
        %590 = vmatpush1.msra.mxu0 0.0
        %591 = vmatprep.subr.mxu0 0.0
        %592 = vmatpush1.msra.mxu0 0.0
        %593 = vmatprep.subr.mxu0 0.0
        %594 = vmatpush1.msra.mxu0 0.0
        %595 = vmatprep.subr.mxu0 0.0
        %596 = vmatpush1.msra.mxu0 0.0
        %597 = vmatprep.subr.mxu0 0.0
        %598 = vmatpush1.msra.mxu0 0.0
        %599 = vmatprep.subr.mxu0 0.0
        %600 = vmatpush1.msra.mxu0 0.0
        %601 = vmatprep.subr.mxu0 0.0
        %602 = vmatpush1.msra.mxu0 0.0
        %603 = vmatprep.subr.mxu0 0.0
        %604 = vmatpush1.msra.mxu0 0.0
        %605 = vmatprep.subr.mxu0 0.0
        %606 = vmatpush1.msra.mxu0 0.0
        %607 = vmatprep.subr.mxu0 0.0
        %608 = vmatpush1.msra.mxu0 0.0
        %609 = vmatprep.subr.mxu0 0.0
        %610 = vmatpush1.msra.mxu0 0.0
        %611 = vmatprep.subr.mxu0 0.0
        %612 = vmatpush1.msra.mxu0 0.0
        %613 = vmatprep.subr.mxu0 0.0
        %614 = vmatpush1.msra.mxu0 0.0
        %615 = vmatprep.mubr.f32.mxu0 0.0
        %616 = vmatmul.mubr.f32.gmra.mrb[0].mxu0 %v275
        %v617 = vpop.f32.mrb[0].mxu0
        %v618 = vadd.f32 0.0, %v617
        %v619 = vpop.f32.mrb[0].mxu0
        %620 = vmatprep.mubr.f32.mxu0 0.0
        %621 = vmatmul.mubr.f32.gmra.mrb[0].mxu0 %v278
        %v622 = vpop.f32.mrb[0].mxu0
        %v623 = vadd.f32 0.0, %v622
        %v624 = vpop.f32.mrb[0].mxu0
        %625 = vmatprep.mubr.f32.mxu0 0.0
        %626 = vmatmul.mubr.f32.gmra.mrb[0].mxu0 %v281
        %v627 = vpop.f32.mrb[0].mxu0
        %v628 = vadd.f32 0.0, %v627
        %v629 = vpop.f32.mrb[0].mxu0
        %630 = vmatprep.mubr.f32.mxu0 0.0
        %631 = vmatmul.mubr.f32.gmra.mrb[0].mxu0 %v284
        %v632 = vpop.f32.mrb[0].mxu0
        %v633 = vadd.f32 0.0, %v632
        %v634 = vpop.f32.mrb[0].mxu0
        %635 = vmatprep.mubr.f32.mxu0 0.0
        %636 = vmatmul.mubr.f32.gmra.mrb[0].mxu0 %v287
        %v637 = vpop.f32.mrb[0].mxu0
        %v638 = vadd.f32 0.0, %v637
        %v639 = vpop.f32.mrb[0].mxu0
        %640 = vmatprep.mubr.f32.mxu0 0.0
        %641 = vmatmul.mubr.f32.gmra.mrb[0].mxu0 %v290
        %v642 = vpop.f32.mrb[0].mxu0
        %v643 = vadd.f32 0.0, %v642
        %v644 = vpop.f32.mrb[0].mxu0
        %645 = vdwg.mxu0
        %v647 = vsel %vm273, %v618, 0
        %v650 = vsel %vm273, %v623, 0
        %v653 = vsel %vm273, %v628, 0
        %v656 = vsel %vm273, %v633, 0
        %v659 = vsel %vm273, %v638, 0
        %v662 = vsel %vm273, %v643, 0
        %664 = vmatprep.subr.mxu0 0.0
        %665 = vmatpush1.msra.mxu0 %v269
        %666 = vmatprep.subr.mxu0 0.0
        %667 = vmatpush1.msra.mxu0 %v270
        %668 = vmatprep.subr.mxu0 0.0
        %669 = vmatpush1.msra.mxu0 0.0
        %670 = vmatprep.subr.mxu0 0.0
        %671 = vmatpush1.msra.mxu0 0.0
        %672 = vmatprep.subr.mxu0 0.0
        %673 = vmatpush1.msra.mxu0 0.0
        %674 = vmatprep.subr.mxu0 0.0
        %675 = vmatpush1.msra.mxu0 0.0
        %676 = vmatprep.subr.mxu0 0.0
        %677 = vmatpush1.msra.mxu0 0.0
        %678 = vmatprep.subr.mxu0 0.0
        %679 = vmatpush1.msra.mxu0 0.0
        %680 = vmatprep.subr.mxu0 0.0
        %681 = vmatpush1.msra.mxu0 0.0
        %682 = vmatprep.subr.mxu0 0.0
        %683 = vmatpush1.msra.mxu0 0.0
        %684 = vmatprep.subr.mxu0 0.0
        %685 = vmatpush1.msra.mxu0 0.0
        %686 = vmatprep.subr.mxu0 0.0
        %687 = vmatpush1.msra.mxu0 0.0
        %688 = vmatprep.subr.mxu0 0.0
        %689 = vmatpush1.msra.mxu0 0.0
        %690 = vmatprep.subr.mxu0 0.0
        %691 = vmatpush1.msra.mxu0 0.0
        %692 = vmatprep.subr.mxu0 0.0
        %693 = vmatpush1.msra.mxu0 0.0
        %694 = vmatprep.subr.mxu0 0.0
        %695 = vmatpush1.msra.mxu0 0.0
        %696 = vmatprep.subr.mxu0 0.0
        %697 = vmatpush1.msra.mxu0 0.0
        %698 = vmatprep.subr.mxu0 0.0
        %699 = vmatpush1.msra.mxu0 0.0
        %700 = vmatprep.subr.mxu0 0.0
        %701 = vmatpush1.msra.mxu0 0.0
        %702 = vmatprep.subr.mxu0 0.0
        %703 = vmatpush1.msra.mxu0 0.0
        %704 = vmatprep.subr.mxu0 0.0
        %705 = vmatpush1.msra.mxu0 0.0
        %706 = vmatprep.subr.mxu0 0.0
        %707 = vmatpush1.msra.mxu0 0.0
        %708 = vmatprep.subr.mxu0 0.0
        %709 = vmatpush1.msra.mxu0 0.0
        %710 = vmatprep.subr.mxu0 0.0
        %711 = vmatpush1.msra.mxu0 0.0
        %712 = vmatprep.subr.mxu0 0.0
        %713 = vmatpush1.msra.mxu0 0.0
        %714 = vmatprep.subr.mxu0 0.0
        %715 = vmatpush1.msra.mxu0 0.0
        %716 = vmatprep.subr.mxu0 0.0
        %717 = vmatpush1.msra.mxu0 0.0
        %718 = vmatprep.subr.mxu0 0.0
        %719 = vmatpush1.msra.mxu0 0.0
        %720 = vmatprep.subr.mxu0 0.0
        %721 = vmatpush1.msra.mxu0 0.0
        %722 = vmatprep.subr.mxu0 0.0
        %723 = vmatpush1.msra.mxu0 0.0
        %724 = vmatprep.subr.mxu0 0.0
        %725 = vmatpush1.msra.mxu0 0.0
        %726 = vmatprep.subr.mxu0 0.0
        %727 = vmatpush1.msra.mxu0 0.0
        %728 = vmatprep.mubr.f32.mxu0 0.0
        %729 = vmatmul.mubr.f32.gmra.mrb[0].mxu0 %v647
        %v730 = vpop.f32.mrb[0].mxu0
        %v731 = vadd.f32 0.0, %v730
        %v732 = vpop.f32.mrb[0].mxu0
        %733 = vmatprep.mubr.f32.mxu0 0.0
        %734 = vmatmul.mubr.f32.gmra.mrb[0].mxu0 %v650
        %v735 = vpop.f32.mrb[0].mxu0
        %v736 = vadd.f32 0.0, %v735
        %v737 = vpop.f32.mrb[0].mxu0
        %738 = vmatprep.mubr.f32.mxu0 0.0
        %739 = vmatmul.mubr.f32.gmra.mrb[0].mxu0 %v653
        %v740 = vpop.f32.mrb[0].mxu0
        %v741 = vadd.f32 0.0, %v740
        %v742 = vpop.f32.mrb[0].mxu0
        %743 = vmatprep.mubr.f32.mxu0 0.0
        %744 = vmatmul.mubr.f32.gmra.mrb[0].mxu0 %v656
        %v745 = vpop.f32.mrb[0].mxu0
        %v746 = vadd.f32 0.0, %v745
        %v747 = vpop.f32.mrb[0].mxu0
        %748 = vmatprep.mubr.f32.mxu0 0.0
        %749 = vmatmul.mubr.f32.gmra.mrb[0].mxu0 %v659
        %v750 = vpop.f32.mrb[0].mxu0
        %v751 = vadd.f32 0.0, %v750
        %v752 = vpop.f32.mrb[0].mxu0
        %753 = vmatprep.mubr.f32.mxu0 0.0
        %754 = vmatmul.mubr.f32.gmra.mrb[0].mxu0 %v662
        %v755 = vpop.f32.mrb[0].mxu0
        %v756 = vadd.f32 0.0, %v755
        %v757 = vpop.f32.mrb[0].mxu0
        %758 = vdwg.mxu0
        %vm759 = vcmp.gt.f32.partialorder %v731, 0.0
        %vm760 = vcmp.gt.f32.partialorder %v736, 0.0
        %vm761 = vcmp.gt.f32.partialorder %v741, 0.0
        %vm762 = vcmp.gt.f32.partialorder %v746, 0.0
        %vm763 = vcmp.gt.f32.partialorder %v751, 0.0
        %vm764 = vcmp.gt.f32.partialorder %v756, 0.0
        %v765 = vsel %vm759, 1, 0
        %v766 = vsel %vm760, 1, 0
        %v767 = vsel %vm761, 1, 0
        %v768 = vsel %vm762, 1, 0
        %v769 = vsel %vm763, 1, 0
        %v770 = vsel %vm764, 1, 0
        %v771 = vcvt.s32.f32 %v765
        %v772 = vcvt.s32.f32 %v766
        %v773 = vcvt.s32.f32 %v767
        %v774 = vcvt.s32.f32 %v768
        %v775 = vcvt.s32.f32 %v769
        %v776 = vcvt.s32.f32 %v770
        %v777 = vpack.c.bf16 %v772, %v771
        %v778 = vpack.c.bf16 %v774, %v773
        %v779 = vpack.c.bf16 %v776, %v775
        %v783 = vunpack.c.l.b16 %v777
        %v784 = vunpack.c.h.b16 %v777
        %v785 = vunpack.c.l.b16 %v778
        %v786 = vunpack.c.h.b16 %v778
        %v787 = vunpack.c.l.b16 %v779
        %v788 = vunpack.c.h.b16 %v779
        %v789 = vpack.c.b16 %v783, %v783
        %v790 = vpack.c.b16 %v784, %v784
        %v791 = vpack.c.b16 %v785, %v785
        %v792 = vpack.c.b16 %v786, %v786
        %v793 = vpack.c.b16 %v787, %v787
        %v794 = vpack.c.b16 %v788, %v788
        %s801 = scalar_lea.vmem %s245, 24 [#allocation5]
        %802 = vst [vmem:[%s801] sm:$0xf] %v789
        %803 = vst [vmem:[%s801 + $0x4] sm:$0xf] %v790
        %804 = vst [vmem:[%s801 + $0x8] sm:$0xf] %v791
        %805 = vst [vmem:[%s801 + $0xc] sm:$0xf] %v792
        %806 = vst [vmem:[%s801 + $0x10] sm:$0xf] %v793
        %807 = vst [vmem:[%s801 + $0x14] sm:$0xf] %v794
        %s808 = scalar_lea.vmem %s255, 32
        %v809 = vld [vmem:[%s808] sm:$0xff]
        %v810 = vld [vmem:[%s808 + $0x8] sm:$0xff]
        %811 = vmatprep.subr.mxu0 0.0
        %812 = vmatpush1.msra.mxu0 %v809
        %813 = vmatprep.subr.mxu0 0.0
        %814 = vmatpush1.msra.mxu0 %v810
        %815 = vmatprep.subr.mxu0 0.0
        %816 = vmatpush1.msra.mxu0 0.0
        %817 = vmatprep.subr.mxu0 0.0
        %818 = vmatpush1.msra.mxu0 0.0
        %819 = vmatprep.subr.mxu0 0.0
        %820 = vmatpush1.msra.mxu0 0.0
        %821 = vmatprep.subr.mxu0 0.0
        %822 = vmatpush1.msra.mxu0 0.0
        %823 = vmatprep.subr.mxu0 0.0
        %824 = vmatpush1.msra.mxu0 0.0
        %825 = vmatprep.subr.mxu0 0.0
        %826 = vmatpush1.msra.mxu0 0.0
        %827 = vmatprep.subr.mxu0 0.0
        %828 = vmatpush1.msra.mxu0 0.0
        %829 = vmatprep.subr.mxu0 0.0
        %830 = vmatpush1.msra.mxu0 0.0
        %831 = vmatprep.subr.mxu0 0.0
        %832 = vmatpush1.msra.mxu0 0.0
        %833 = vmatprep.subr.mxu0 0.0
        %834 = vmatpush1.msra.mxu0 0.0
        %835 = vmatprep.subr.mxu0 0.0
        %836 = vmatpush1.msra.mxu0 0.0
        %837 = vmatprep.subr.mxu0 0.0
        %838 = vmatpush1.msra.mxu0 0.0
        %839 = vmatprep.subr.mxu0 0.0
        %840 = vmatpush1.msra.mxu0 0.0
        %841 = vmatprep.subr.mxu0 0.0
        %842 = vmatpush1.msra.mxu0 0.0
        %843 = vmatprep.subr.mxu0 0.0
        %844 = vmatpush1.msra.mxu0 0.0
        %845 = vmatprep.subr.mxu0 0.0
        %846 = vmatpush1.msra.mxu0 0.0
        %847 = vmatprep.subr.mxu0 0.0
        %848 = vmatpush1.msra.mxu0 0.0
        %849 = vmatprep.subr.mxu0 0.0
        %850 = vmatpush1.msra.mxu0 0.0
        %851 = vmatprep.subr.mxu0 0.0
        %852 = vmatpush1.msra.mxu0 0.0
        %853 = vmatprep.subr.mxu0 0.0
        %854 = vmatpush1.msra.mxu0 0.0
        %855 = vmatprep.subr.mxu0 0.0
        %856 = vmatpush1.msra.mxu0 0.0
        %857 = vmatprep.subr.mxu0 0.0
        %858 = vmatpush1.msra.mxu0 0.0
        %859 = vmatprep.subr.mxu0 0.0
        %860 = vmatpush1.msra.mxu0 0.0
        %861 = vmatprep.subr.mxu0 0.0
        %862 = vmatpush1.msra.mxu0 0.0
        %863 = vmatprep.subr.mxu0 0.0
        %864 = vmatpush1.msra.mxu0 0.0
        %865 = vmatprep.subr.mxu0 0.0
        %866 = vmatpush1.msra.mxu0 0.0
        %867 = vmatprep.subr.mxu0 0.0
        %868 = vmatpush1.msra.mxu0 0.0
        %869 = vmatprep.subr.mxu0 0.0
        %870 = vmatpush1.msra.mxu0 0.0
        %871 = vmatprep.subr.mxu0 0.0
        %872 = vmatpush1.msra.mxu0 0.0
        %873 = vmatprep.subr.mxu0 0.0
        %874 = vmatpush1.msra.mxu0 0.0
        %875 = vmatprep.mubr.f32.mxu0 0.0
        %876 = vmatmul.mubr.f32.gmra.mrb[0].mxu0 %v275
        %v877 = vpop.f32.mrb[0].mxu0
        %v878 = vadd.f32 0.0, %v877
        %v879 = vpop.f32.mrb[0].mxu0
        %880 = vmatprep.mubr.f32.mxu0 0.0
        %881 = vmatmul.mubr.f32.gmra.mrb[0].mxu0 %v278
        %v882 = vpop.f32.mrb[0].mxu0
        %v883 = vadd.f32 0.0, %v882
        %v884 = vpop.f32.mrb[0].mxu0
        %885 = vmatprep.mubr.f32.mxu0 0.0
        %886 = vmatmul.mubr.f32.gmra.mrb[0].mxu0 %v281
        %v887 = vpop.f32.mrb[0].mxu0
        %v888 = vadd.f32 0.0, %v887
        %v889 = vpop.f32.mrb[0].mxu0
        %890 = vmatprep.mubr.f32.mxu0 0.0
        %891 = vmatmul.mubr.f32.gmra.mrb[0].mxu0 %v284
        %v892 = vpop.f32.mrb[0].mxu0
        %v893 = vadd.f32 0.0, %v892
        %v894 = vpop.f32.mrb[0].mxu0
        %895 = vmatprep.mubr.f32.mxu0 0.0
        %896 = vmatmul.mubr.f32.gmra.mrb[0].mxu0 %v287
        %v897 = vpop.f32.mrb[0].mxu0
        %v898 = vadd.f32 0.0, %v897
        %v899 = vpop.f32.mrb[0].mxu0
        %900 = vmatprep.mubr.f32.mxu0 0.0
        %901 = vmatmul.mubr.f32.gmra.mrb[0].mxu0 %v290
        %v902 = vpop.f32.mrb[0].mxu0
        %v903 = vadd.f32 0.0, %v902
        %v904 = vpop.f32.mrb[0].mxu0
        %905 = vdwg.mxu0
        %v907 = vsel %vm273, %v878, 0
        %v910 = vsel %vm273, %v883, 0
        %v913 = vsel %vm273, %v888, 0
        %v916 = vsel %vm273, %v893, 0
        %v919 = vsel %vm273, %v898, 0
        %v922 = vsel %vm273, %v903, 0
        %924 = vmatprep.subr.mxu0 0.0
        %925 = vmatpush1.msra.mxu0 %v269
        %926 = vmatprep.subr.mxu0 0.0
        %927 = vmatpush1.msra.mxu0 %v270
        %928 = vmatprep.subr.mxu0 0.0
        %929 = vmatpush1.msra.mxu0 0.0
        %930 = vmatprep.subr.mxu0 0.0
        %931 = vmatpush1.msra.mxu0 0.0
        %932 = vmatprep.subr.mxu0 0.0
        %933 = vmatpush1.msra.mxu0 0.0
        %934 = vmatprep.subr.mxu0 0.0
        %935 = vmatpush1.msra.mxu0 0.0
        %936 = vmatprep.subr.mxu0 0.0
        %937 = vmatpush1.msra.mxu0 0.0
        %938 = vmatprep.subr.mxu0 0.0
        %939 = vmatpush1.msra.mxu0 0.0
        %940 = vmatprep.subr.mxu0 0.0
        %941 = vmatpush1.msra.mxu0 0.0
        %942 = vmatprep.subr.mxu0 0.0
        %943 = vmatpush1.msra.mxu0 0.0
        %944 = vmatprep.subr.mxu0 0.0
        %945 = vmatpush1.msra.mxu0 0.0
        %946 = vmatprep.subr.mxu0 0.0
        %947 = vmatpush1.msra.mxu0 0.0
        %948 = vmatprep.subr.mxu0 0.0
        %949 = vmatpush1.msra.mxu0 0.0
        %950 = vmatprep.subr.mxu0 0.0
        %951 = vmatpush1.msra.mxu0 0.0
        %952 = vmatprep.subr.mxu0 0.0
        %953 = vmatpush1.msra.mxu0 0.0
        %954 = vmatprep.subr.mxu0 0.0
        %955 = vmatpush1.msra.mxu0 0.0
        %956 = vmatprep.subr.mxu0 0.0
        %957 = vmatpush1.msra.mxu0 0.0
        %958 = vmatprep.subr.mxu0 0.0
        %959 = vmatpush1.msra.mxu0 0.0
        %960 = vmatprep.subr.mxu0 0.0
        %961 = vmatpush1.msra.mxu0 0.0
        %962 = vmatprep.subr.mxu0 0.0
        %963 = vmatpush1.msra.mxu0 0.0
        %964 = vmatprep.subr.mxu0 0.0
        %965 = vmatpush1.msra.mxu0 0.0
        %966 = vmatprep.subr.mxu0 0.0
        %967 = vmatpush1.msra.mxu0 0.0
        %968 = vmatprep.subr.mxu0 0.0
        %969 = vmatpush1.msra.mxu0 0.0
        %970 = vmatprep.subr.mxu0 0.0
        %971 = vmatpush1.msra.mxu0 0.0
        %972 = vmatprep.subr.mxu0 0.0
        %973 = vmatpush1.msra.mxu0 0.0
        %974 = vmatprep.subr.mxu0 0.0
        %975 = vmatpush1.msra.mxu0 0.0
        %976 = vmatprep.subr.mxu0 0.0
        %977 = vmatpush1.msra.mxu0 0.0
        %978 = vmatprep.subr.mxu0 0.0
        %979 = vmatpush1.msra.mxu0 0.0
        %980 = vmatprep.subr.mxu0 0.0
        %981 = vmatpush1.msra.mxu0 0.0
        %982 = vmatprep.subr.mxu0 0.0
        %983 = vmatpush1.msra.mxu0 0.0
        %984 = vmatprep.subr.mxu0 0.0
        %985 = vmatpush1.msra.mxu0 0.0
        %986 = vmatprep.subr.mxu0 0.0
        %987 = vmatpush1.msra.mxu0 0.0
        %988 = vmatprep.mubr.f32.mxu0 0.0
        %989 = vmatmul.mubr.f32.gmra.mrb[0].mxu0 %v907
        %v990 = vpop.f32.mrb[0].mxu0
        %v991 = vadd.f32 0.0, %v990
        %v992 = vpop.f32.mrb[0].mxu0
        %993 = vmatprep.mubr.f32.mxu0 0.0
        %994 = vmatmul.mubr.f32.gmra.mrb[0].mxu0 %v910
        %v995 = vpop.f32.mrb[0].mxu0
        %v996 = vadd.f32 0.0, %v995
        %v997 = vpop.f32.mrb[0].mxu0
        %998 = vmatprep.mubr.f32.mxu0 0.0
        %999 = vmatmul.mubr.f32.gmra.mrb[0].mxu0 %v913
        %v1000 = vpop.f32.mrb[0].mxu0
        %v1001 = vadd.f32 0.0, %v1000
        %v1002 = vpop.f32.mrb[0].mxu0
        %1003 = vmatprep.mubr.f32.mxu0 0.0
        %1004 = vmatmul.mubr.f32.gmra.mrb[0].mxu0 %v916
        %v1005 = vpop.f32.mrb[0].mxu0
        %v1006 = vadd.f32 0.0, %v1005
        %v1007 = vpop.f32.mrb[0].mxu0
        %1008 = vmatprep.mubr.f32.mxu0 0.0
        %1009 = vmatmul.mubr.f32.gmra.mrb[0].mxu0 %v919
        %v1010 = vpop.f32.mrb[0].mxu0
        %v1011 = vadd.f32 0.0, %v1010
        %v1012 = vpop.f32.mrb[0].mxu0
        %1013 = vmatprep.mubr.f32.mxu0 0.0
        %1014 = vmatmul.mubr.f32.gmra.mrb[0].mxu0 %v922
        %v1015 = vpop.f32.mrb[0].mxu0
        %v1016 = vadd.f32 0.0, %v1015
        %v1017 = vpop.f32.mrb[0].mxu0
        %1018 = vdwg.mxu0
        %vm1019 = vcmp.gt.f32.partialorder %v991, 0.0
        %vm1020 = vcmp.gt.f32.partialorder %v996, 0.0
        %vm1021 = vcmp.gt.f32.partialorder %v1001, 0.0
        %vm1022 = vcmp.gt.f32.partialorder %v1006, 0.0
        %vm1023 = vcmp.gt.f32.partialorder %v1011, 0.0
        %vm1024 = vcmp.gt.f32.partialorder %v1016, 0.0
        %v1025 = vsel %vm1019, 1, 0
        %v1026 = vsel %vm1020, 1, 0
        %v1027 = vsel %vm1021, 1, 0
        %v1028 = vsel %vm1022, 1, 0
        %v1029 = vsel %vm1023, 1, 0
        %v1030 = vsel %vm1024, 1, 0
        %v1031 = vcvt.s32.f32 %v1025
        %v1032 = vcvt.s32.f32 %v1026
        %v1033 = vcvt.s32.f32 %v1027
        %v1034 = vcvt.s32.f32 %v1028
        %v1035 = vcvt.s32.f32 %v1029
        %v1036 = vcvt.s32.f32 %v1030
        %v1037 = vpack.c.bf16 %v1032, %v1031
        %v1038 = vpack.c.bf16 %v1034, %v1033
        %v1039 = vpack.c.bf16 %v1036, %v1035
        %v1043 = vunpack.c.l.b16 %v1037
        %v1044 = vunpack.c.h.b16 %v1037
        %v1045 = vunpack.c.l.b16 %v1038
        %v1046 = vunpack.c.h.b16 %v1038
        %v1047 = vunpack.c.l.b16 %v1039
        %v1048 = vunpack.c.h.b16 %v1039
        %v1049 = vpack.c.b16 %v1043, %v1043
        %v1050 = vpack.c.b16 %v1044, %v1044
        %v1051 = vpack.c.b16 %v1045, %v1045
        %v1052 = vpack.c.b16 %v1046, %v1046
        %v1053 = vpack.c.b16 %v1047, %v1047
        %v1054 = vpack.c.b16 %v1048, %v1048
        %s1061 = scalar_lea.vmem %s245, 48 [#allocation5]
        %1062 = vst [vmem:[%s1061] sm:$0xf] %v1049
        %1063 = vst [vmem:[%s1061 + $0x4] sm:$0xf] %v1050
        %1064 = vst [vmem:[%s1061 + $0x8] sm:$0xf] %v1051
        %1065 = vst [vmem:[%s1061 + $0xc] sm:$0xf] %v1052
        %1066 = vst [vmem:[%s1061 + $0x10] sm:$0xf] %v1053
        %1067 = vst [vmem:[%s1061 + $0x14] sm:$0xf] %v1054
        %s1068 = scalar_lea.vmem %s255, 48
        %v1069 = vld [vmem:[%s1068] sm:$0xff]
        %v1070 = vld [vmem:[%s1068 + $0x8] sm:$0xff]
        %1071 = vmatprep.subr.mxu0 0.0
        %1072 = vmatpush1.msra.mxu0 %v1069
        %1073 = vmatprep.subr.mxu0 0.0
        %1074 = vmatpush1.msra.mxu0 %v1070
        %1075 = vmatprep.subr.mxu0 0.0
        %1076 = vmatpush1.msra.mxu0 0.0
        %1077 = vmatprep.subr.mxu0 0.0
        %1078 = vmatpush1.msra.mxu0 0.0
        %1079 = vmatprep.subr.mxu0 0.0
        %1080 = vmatpush1.msra.mxu0 0.0
        %1081 = vmatprep.subr.mxu0 0.0
        %1082 = vmatpush1.msra.mxu0 0.0
        %1083 = vmatprep.subr.mxu0 0.0
        %1084 = vmatpush1.msra.mxu0 0.0
        %1085 = vmatprep.subr.mxu0 0.0
        %1086 = vmatpush1.msra.mxu0 0.0
        %1087 = vmatprep.subr.mxu0 0.0
        %1088 = vmatpush1.msra.mxu0 0.0
        %1089 = vmatprep.subr.mxu0 0.0
        %1090 = vmatpush1.msra.mxu0 0.0
        %1091 = vmatprep.subr.mxu0 0.0
        %1092 = vmatpush1.msra.mxu0 0.0
        %1093 = vmatprep.subr.mxu0 0.0
        %1094 = vmatpush1.msra.mxu0 0.0
        %1095 = vmatprep.subr.mxu0 0.0
        %1096 = vmatpush1.msra.mxu0 0.0
        %1097 = vmatprep.subr.mxu0 0.0
        %1098 = vmatpush1.msra.mxu0 0.0
        %1099 = vmatprep.subr.mxu0 0.0
        %1100 = vmatpush1.msra.mxu0 0.0
        %1101 = vmatprep.subr.mxu0 0.0
        %1102 = vmatpush1.msra.mxu0 0.0
        %1103 = vmatprep.subr.mxu0 0.0
        %1104 = vmatpush1.msra.mxu0 0.0
        %1105 = vmatprep.subr.mxu0 0.0
        %1106 = vmatpush1.msra.mxu0 0.0
        %1107 = vmatprep.subr.mxu0 0.0
        %1108 = vmatpush1.msra.mxu0 0.0
        %1109 = vmatprep.subr.mxu0 0.0
        %1110 = vmatpush1.msra.mxu0 0.0
        %1111 = vmatprep.subr.mxu0 0.0
        %1112 = vmatpush1.msra.mxu0 0.0
        %1113 = vmatprep.subr.mxu0 0.0
        %1114 = vmatpush1.msra.mxu0 0.0
        %1115 = vmatprep.subr.mxu0 0.0
        %1116 = vmatpush1.msra.mxu0 0.0
        %1117 = vmatprep.subr.mxu0 0.0
        %1118 = vmatpush1.msra.mxu0 0.0
        %1119 = vmatprep.subr.mxu0 0.0
        %1120 = vmatpush1.msra.mxu0 0.0
        %1121 = vmatprep.subr.mxu0 0.0
        %1122 = vmatpush1.msra.mxu0 0.0
        %1123 = vmatprep.subr.mxu0 0.0
        %1124 = vmatpush1.msra.mxu0 0.0
        %1125 = vmatprep.subr.mxu0 0.0
        %1126 = vmatpush1.msra.mxu0 0.0
        %1127 = vmatprep.subr.mxu0 0.0
        %1128 = vmatpush1.msra.mxu0 0.0
        %1129 = vmatprep.subr.mxu0 0.0
        %1130 = vmatpush1.msra.mxu0 0.0
        %1131 = vmatprep.subr.mxu0 0.0
        %1132 = vmatpush1.msra.mxu0 0.0
        %1133 = vmatprep.subr.mxu0 0.0
        %1134 = vmatpush1.msra.mxu0 0.0
        %1135 = vmatprep.mubr.f32.mxu0 0.0
        %1136 = vmatmul.mubr.f32.gmra.mrb[0].mxu0 %v275
        %v1137 = vpop.f32.mrb[0].mxu0
        %v1138 = vadd.f32 0.0, %v1137
        %v1139 = vpop.f32.mrb[0].mxu0
        %1140 = vmatprep.mubr.f32.mxu0 0.0
        %1141 = vmatmul.mubr.f32.gmra.mrb[0].mxu0 %v278
        %v1142 = vpop.f32.mrb[0].mxu0
        %v1143 = vadd.f32 0.0, %v1142
        %v1144 = vpop.f32.mrb[0].mxu0
        %1145 = vmatprep.mubr.f32.mxu0 0.0
        %1146 = vmatmul.mubr.f32.gmra.mrb[0].mxu0 %v281
        %v1147 = vpop.f32.mrb[0].mxu0
        %v1148 = vadd.f32 0.0, %v1147
        %v1149 = vpop.f32.mrb[0].mxu0
        %1150 = vmatprep.mubr.f32.mxu0 0.0
        %1151 = vmatmul.mubr.f32.gmra.mrb[0].mxu0 %v284
        %v1152 = vpop.f32.mrb[0].mxu0
        %v1153 = vadd.f32 0.0, %v1152
        %v1154 = vpop.f32.mrb[0].mxu0
        %1155 = vmatprep.mubr.f32.mxu0 0.0
        %1156 = vmatmul.mubr.f32.gmra.mrb[0].mxu0 %v287
        %v1157 = vpop.f32.mrb[0].mxu0
        %v1158 = vadd.f32 0.0, %v1157
        %v1159 = vpop.f32.mrb[0].mxu0
        %1160 = vmatprep.mubr.f32.mxu0 0.0
        %1161 = vmatmul.mubr.f32.gmra.mrb[0].mxu0 %v290
        %v1162 = vpop.f32.mrb[0].mxu0
        %v1163 = vadd.f32 0.0, %v1162
        %v1164 = vpop.f32.mrb[0].mxu0
        %1165 = vdwg.mxu0
        %v1167 = vsel %vm273, %v1138, 0
        %v1170 = vsel %vm273, %v1143, 0
        %v1173 = vsel %vm273, %v1148, 0
        %v1176 = vsel %vm273, %v1153, 0
        %v1179 = vsel %vm273, %v1158, 0
        %v1182 = vsel %vm273, %v1163, 0
        %1184 = vmatprep.subr.mxu0 0.0
        %1185 = vmatpush1.msra.mxu0 %v269
        %1186 = vmatprep.subr.mxu0 0.0
        %1187 = vmatpush1.msra.mxu0 %v270
        %1188 = vmatprep.subr.mxu0 0.0
        %1189 = vmatpush1.msra.mxu0 0.0
        %1190 = vmatprep.subr.mxu0 0.0
        %1191 = vmatpush1.msra.mxu0 0.0
        %1192 = vmatprep.subr.mxu0 0.0
        %1193 = vmatpush1.msra.mxu0 0.0
        %1194 = vmatprep.subr.mxu0 0.0
        %1195 = vmatpush1.msra.mxu0 0.0
        %1196 = vmatprep.subr.mxu0 0.0
        %1197 = vmatpush1.msra.mxu0 0.0
        %1198 = vmatprep.subr.mxu0 0.0
        %1199 = vmatpush1.msra.mxu0 0.0
        %1200 = vmatprep.subr.mxu0 0.0
        %1201 = vmatpush1.msra.mxu0 0.0
        %1202 = vmatprep.subr.mxu0 0.0
        %1203 = vmatpush1.msra.mxu0 0.0
        %1204 = vmatprep.subr.mxu0 0.0
        %1205 = vmatpush1.msra.mxu0 0.0
        %1206 = vmatprep.subr.mxu0 0.0
        %1207 = vmatpush1.msra.mxu0 0.0
        %1208 = vmatprep.subr.mxu0 0.0
        %1209 = vmatpush1.msra.mxu0 0.0
        %1210 = vmatprep.subr.mxu0 0.0
        %1211 = vmatpush1.msra.mxu0 0.0
        %1212 = vmatprep.subr.mxu0 0.0
        %1213 = vmatpush1.msra.mxu0 0.0
        %1214 = vmatprep.subr.mxu0 0.0
        %1215 = vmatpush1.msra.mxu0 0.0
        %1216 = vmatprep.subr.mxu0 0.0
        %1217 = vmatpush1.msra.mxu0 0.0
        %1218 = vmatprep.subr.mxu0 0.0
        %1219 = vmatpush1.msra.mxu0 0.0
        %1220 = vmatprep.subr.mxu0 0.0
        %1221 = vmatpush1.msra.mxu0 0.0
        %1222 = vmatprep.subr.mxu0 0.0
        %1223 = vmatpush1.msra.mxu0 0.0
        %1224 = vmatprep.subr.mxu0 0.0
        %1225 = vmatpush1.msra.mxu0 0.0
        %1226 = vmatprep.subr.mxu0 0.0
        %1227 = vmatpush1.msra.mxu0 0.0
        %1228 = vmatprep.subr.mxu0 0.0
        %1229 = vmatpush1.msra.mxu0 0.0
        %1230 = vmatprep.subr.mxu0 0.0
        %1231 = vmatpush1.msra.mxu0 0.0
        %1232 = vmatprep.subr.mxu0 0.0
        %1233 = vmatpush1.msra.mxu0 0.0
        %1234 = vmatprep.subr.mxu0 0.0
        %1235 = vmatpush1.msra.mxu0 0.0
        %1236 = vmatprep.subr.mxu0 0.0
        %1237 = vmatpush1.msra.mxu0 0.0
        %1238 = vmatprep.subr.mxu0 0.0
        %1239 = vmatpush1.msra.mxu0 0.0
        %1240 = vmatprep.subr.mxu0 0.0
        %1241 = vmatpush1.msra.mxu0 0.0
        %1242 = vmatprep.subr.mxu0 0.0
        %1243 = vmatpush1.msra.mxu0 0.0
        %1244 = vmatprep.subr.mxu0 0.0
        %1245 = vmatpush1.msra.mxu0 0.0
        %1246 = vmatprep.subr.mxu0 0.0
        %1247 = vmatpush1.msra.mxu0 0.0
        %1248 = vmatprep.mubr.f32.mxu0 0.0
        %1249 = vmatmul.mubr.f32.gmra.mrb[0].mxu0 %v1167
        %v1250 = vpop.f32.mrb[0].mxu0
        %v1251 = vadd.f32 0.0, %v1250
        %v1252 = vpop.f32.mrb[0].mxu0
        %1253 = vmatprep.mubr.f32.mxu0 0.0
        %1254 = vmatmul.mubr.f32.gmra.mrb[0].mxu0 %v1170
        %v1255 = vpop.f32.mrb[0].mxu0
        %v1256 = vadd.f32 0.0, %v1255
        %v1257 = vpop.f32.mrb[0].mxu0
        %1258 = vmatprep.mubr.f32.mxu0 0.0
        %1259 = vmatmul.mubr.f32.gmra.mrb[0].mxu0 %v1173
        %v1260 = vpop.f32.mrb[0].mxu0
        %v1261 = vadd.f32 0.0, %v1260
        %v1262 = vpop.f32.mrb[0].mxu0
        %1263 = vmatprep.mubr.f32.mxu0 0.0
        %1264 = vmatmul.mubr.f32.gmra.mrb[0].mxu0 %v1176
        %v1265 = vpop.f32.mrb[0].mxu0
        %v1266 = vadd.f32 0.0, %v1265
        %v1267 = vpop.f32.mrb[0].mxu0
        %1268 = vmatprep.mubr.f32.mxu0 0.0
        %1269 = vmatmul.mubr.f32.gmra.mrb[0].mxu0 %v1179
        %v1270 = vpop.f32.mrb[0].mxu0
        %v1271 = vadd.f32 0.0, %v1270
        %v1272 = vpop.f32.mrb[0].mxu0
        %1273 = vmatprep.mubr.f32.mxu0 0.0
        %1274 = vmatmul.mubr.f32.gmra.mrb[0].mxu0 %v1182
        %v1275 = vpop.f32.mrb[0].mxu0
        %v1276 = vadd.f32 0.0, %v1275
        %v1277 = vpop.f32.mrb[0].mxu0
        %1278 = vdwg.mxu0
        %vm1279 = vcmp.gt.f32.partialorder %v1251, 0.0
        %vm1280 = vcmp.gt.f32.partialorder %v1256, 0.0
        %vm1281 = vcmp.gt.f32.partialorder %v1261, 0.0
        %vm1282 = vcmp.gt.f32.partialorder %v1266, 0.0
        %vm1283 = vcmp.gt.f32.partialorder %v1271, 0.0
        %vm1284 = vcmp.gt.f32.partialorder %v1276, 0.0
        %v1285 = vsel %vm1279, 1, 0
        %v1286 = vsel %vm1280, 1, 0
        %v1287 = vsel %vm1281, 1, 0
        %v1288 = vsel %vm1282, 1, 0
        %v1289 = vsel %vm1283, 1, 0
        %v1290 = vsel %vm1284, 1, 0
        %v1291 = vcvt.s32.f32 %v1285
        %v1292 = vcvt.s32.f32 %v1286
        %v1293 = vcvt.s32.f32 %v1287
        %v1294 = vcvt.s32.f32 %v1288
        %v1295 = vcvt.s32.f32 %v1289
        %v1296 = vcvt.s32.f32 %v1290
        %v1297 = vpack.c.bf16 %v1292, %v1291
        %v1298 = vpack.c.bf16 %v1294, %v1293
        %v1299 = vpack.c.bf16 %v1296, %v1295
        %v1303 = vunpack.c.l.b16 %v1297
        %v1304 = vunpack.c.h.b16 %v1297
        %v1305 = vunpack.c.l.b16 %v1298
        %v1306 = vunpack.c.h.b16 %v1298
        %v1307 = vunpack.c.l.b16 %v1299
        %v1308 = vunpack.c.h.b16 %v1299
        %v1309 = vpack.c.b16 %v1303, %v1303
        %v1310 = vpack.c.b16 %v1304, %v1304
        %v1311 = vpack.c.b16 %v1305, %v1305
        %v1312 = vpack.c.b16 %v1306, %v1306
        %v1313 = vpack.c.b16 %v1307, %v1307
        %v1314 = vpack.c.b16 %v1308, %v1308
        %s1321 = scalar_lea.vmem %s245, 72 [#allocation5]
        %1322 = vst [vmem:[%s1321] sm:$0xf] %v1309
        %1323 = vst [vmem:[%s1321 + $0x4] sm:$0xf] %v1310
        %1324 = vst [vmem:[%s1321 + $0x8] sm:$0xf] %v1311
        %1325 = vst [vmem:[%s1321 + $0xc] sm:$0xf] %v1312
        %1326 = vst [vmem:[%s1321 + $0x10] sm:$0xf] %v1313
        %1327 = vst [vmem:[%s1321 + $0x14] sm:$0xf] %v1314
        %s1328 = sand.u32 %s122, 1
        %s1329 = scalar_lea.sflag [#allocation4], %s1328
        %s1330 = sand.u32 %s122, 1
        %s1331 = smul.addr %s1330, 96
        %s1332 = scalar_lea.vmem [#allocation5], %s1331
        // Predicated region
        $region37: #{tpu_custom_call.1} parent=31 // pred_check
          %p1333 = pneg %p132
        $region38: #{tpu_custom_call.1} parent=31 // pred_check_branch
          %1335 = sbr.rel (%p1333) target = $region40
        $region39: #{tpu_custom_call.1} parent=31 // pred_region
          %s1336 = smul.u32 4, %s25
          %s1338 = ssub.s32 1536, 1536
          %1339 = vsyncadd %s1329, %s1338
          %s1340 = smul.addr %s1336, 6
          %s1341 = smul.addr %s24, 24
          %s1342 = sadd.s32 %s1340, %s1341
          %s1343 = smul.addr %s1342, 64
          %s1344 = scalar_lea.hbm %s3, %s1343
          %s1345 = sshll.u32 %s1332, 4
          %s1346 = int_to_ptr.vmem [resolvable:$true] %s1345
          %1351 = dma.vmem_to_hbm [thread:$0]  %s1346, 1536, %s1344, %s1329, 64, 64, 4
        $region40: #{tpu_custom_call.1} parent=31 // pred_fallthru
          _
      $region32: #{tpu_custom_call.1} parent=5 // pred_fallthru
        _
      %p1352 = scmp.le.s32.totalorder 2, %s15
      // Predicated region
      $region41: #{tpu_custom_call.1} parent=5 // pred_check
        %p1353 = pneg %p1352
      $region42: #{tpu_custom_call.1} parent=5 // pred_check_branch
        %1355 = sbr.rel (%p1353) target = $region44
      $region43: #{tpu_custom_call.1} parent=5 // pred_region
        %s1356 = ssub.s32 %s15, 2
        // Predicated region
        $region45: #{tpu_custom_call.1} parent=43 // pred_check
          %p1357 = pneg %p138
        $region46: #{tpu_custom_call.1} parent=43 // pred_check_branch
          %1359 = sbr.rel (%p1357) target = $region48
        $region47: #{tpu_custom_call.1} parent=43 // pred_region
          %s1360 = sand.u32 %s123, 1
          %s1361 = scalar_lea.sflag [#allocation4], %s1360
          %s1362 = sand.u32 %s123, 1
          %s1363 = smul.addr %s1362, 96
          %s1364 = scalar_lea.vmem [#allocation5], %s1363
          %1365 = dma.done %s1361, 1536
        $region48: #{tpu_custom_call.1} parent=43 // pred_fallthru
          _
      $region44: #{tpu_custom_call.1} parent=5 // pred_fallthru
        _
    $region6: #{tpu_custom_call.1} parent=1 // loop_footer
      %s19 = sadd.s32 1, %s15
    $region7: #{tpu_custom_call.1} parent=1 // loop_footer_branch
      %14 = sbr.rel target = $region3
    $region8: #{tpu_custom_call.1} parent=1 // loop_exit
      _
    %1366 = vsyncpa [#allocation3], 1
    %s1367 = scalar_lea.sflag [#allocation3], 1
    %1368 = vsyncpa %s1367, 1
    %1369 = vsyncpa [#allocation4], 1
    %s1370 = scalar_lea.sflag [#allocation4], 1
    %1371 = vsyncpa %s1370, 1

</llo_original>
